<compile_context>
chip_gen: v7x
topology: tpu7x:2x2x1
jax: 0.10.0
libtpu: 0.0.40
codegen_flags: <defaults>
</compile_context>

<pallas_src>
import math
from functools import partial

import jax
import jax.numpy as jnp
from jax.experimental import pallas as pl
from jax.experimental.pallas import tpu as pltpu

HIDDEN = 64
N_HID_LAYERS = 8          # the eight Linear(64,64)+ReLU blocks
IN_DIM = 32               # 16 SH components (levels=4) for wi_local + 16 for wo_local
OUT_DIM = 3


def _cdiv(a, b):
    return -(-a // b)


def _sh16_components(x, y, z):
    """Real spherical harmonics, levels=4 -> list of 16 components (nerfstudio)."""
    xx, yy, zz = x * x, y * y, z * z
    return [
        jnp.full_like(x, 0.28209479177387814),
        0.4886025119029199 * y,
        0.4886025119029199 * z,
        0.4886025119029199 * x,
        1.0925484305920792 * x * y,
        1.0925484305920792 * y * z,
        0.9461746957575601 * zz - 0.31539156525252005,
        1.0925484305920792 * x * z,
        0.5462742152960396 * (xx - yy),
        0.5900435899266435 * y * (3.0 * xx - yy),
        2.890611442640554 * x * y * z,
        0.4570457994644658 * y * (5.0 * zz - 1.0),
        0.3731763325901154 * z * (5.0 * zz - 3.0),
        0.4570457994644658 * x * (5.0 * zz - 1.0),
        1.445305721320277 * z * (xx - yy),
        0.5900435899266435 * x * (xx - 3.0 * yy),
    ]


def mlp_brdf_kernel(dirs_ref, w0t_ref, b0_ref, wht_ref, bht_ref,
                    woutt_ref, boutt_ref, out_ref, *, n_chunks, mxu_dtype):
    d = dirs_ref[...]                              # (9, TB) f32, batch on lanes
    tb = d.shape[1]
    chunk = tb // n_chunks

    # rows: [wix, wox, wiy, woy, wiz, woz, nx, ny, nz]
    vx, vy, vz = d[0:2], d[2:4], d[4:6]            # (2, TB): row0 = wi, row1 = wo
    nx, ny, nz = d[6:7], d[7:8], d[8:9]            # (1, TB)

    # --- get_normal_space: orthonormal basis (tangent, bitangent, normal) ---
    # TODO(synk): exact get_normal_space() source was not provided; using the standard
    # up-vector-cross ONB (up = +z unless |nz| >= 0.999, then +x), columns = (t, b, n).
    use_z_up = jnp.abs(nz) < 0.999
    cx = jnp.where(use_z_up, -ny, jnp.zeros_like(ny))
    cy = jnp.where(use_z_up, nx, -nz)
    cz = jnp.where(use_z_up, jnp.zeros_like(nx), ny)
    inv_len = jax.lax.rsqrt(cx * cx + cy * cy + cz * cz + 1e-20)
    tx, ty, tz = cx * inv_len, cy * inv_len, cz * inv_len
    bx = ny * tz - nz * ty
    by = nz * tx - nx * tz
    bz = nx * ty - ny * tx

    # world -> local for wi and wo simultaneously ((2, TB) rows, ONB rows broadcast)
    lx = vx * tx + vy * ty + vz * tz               # v . tangent
    ly = vx * bx + vy * by + vz * bz               # v . bitangent
    lz = vx * nx + vy * ny + vz * nz               # v . normal

    # 16 components, each (2, TB) -> (32, TB); row 2k = wi comp k, row 2k+1 = wo comp k.
    # w0t was column-permuted in prepare_params() to match this interleaved order.
    x = jnp.concatenate(_sh16_components(lx, ly, lz), axis=0)   # (32, TB) f32

    # --- MLP: h = relu(W^T @ h + b), batch tile on the MXU N dimension ---
    w0t = w0t_ref[...]                                           # (64, 32) mxu_dtype
    b0b = jnp.broadcast_to(b0_ref[...], (HIDDEN, chunk))         # hoisted broadcast
    hs = []
    for j in range(n_chunks):
        xc = x[:, j * chunk:(j + 1) * chunk].astype(mxu_dtype)
        hs.append(jnp.maximum(
            jnp.dot(w0t, xc, preferred_element_type=jnp.float32) + b0b, 0.0))

    for i in range(N_HID_LAYERS):
        wt = wht_ref[i]                                          # (64, 64) mxu_dtype
        bb = jnp.broadcast_to(bht_ref[i], (HIDDEN, chunk))
        hs = [jnp.maximum(
            jnp.dot(wt, h.astype(mxu_dtype), preferred_element_type=jnp.float32) + bb,
            0.0) for h in hs]

    woutt = woutt_ref[...]                                       # (3, 64) mxu_dtype
    bob = jnp.broadcast_to(boutt_ref[...], (OUT_DIM, chunk))
    for j, h in enumerate(hs):
        y = jnp.exp(jnp.dot(woutt, h.astype(mxu_dtype),
                            preferred_element_type=jnp.float32) + bob)
        out_ref[:, j * chunk:(j + 1) * chunk] = y.astype(out_ref.dtype)


def _default_chunk_width():
    """MXU-filling chunk width per TPU generation (256 on v6e/v7x, 128 on v5e)."""
    try:
        kind = jax.devices()[0].device_kind.lower()
    except Exception:
        return 256
    if "v5 lite" in kind or "v5e" in kind or "v5lite" in kind:
        return 128
    return 256


def prepare_params(params, mxu_dtype=jnp.bfloat16):
    """One-time parameter prep: transpose to (out,in), cast MXU operands, permute
    w0 input columns to the kernel's interleaved (wi0, wo0, wi1, wo1, ...) order."""
    w0, b0, wh, bh, wout, bout = params
    perm = jnp.array([j // 2 + 16 * (j % 2) for j in range(IN_DIM)], dtype=jnp.int32)
    w0t = jnp.asarray(w0, jnp.float32).T[:, perm].astype(mxu_dtype)      # (64, 32)
    wht = jnp.transpose(jnp.asarray(wh, jnp.float32), (0, 2, 1)).astype(mxu_dtype)
    woutt = jnp.asarray(wout, jnp.float32).T.astype(mxu_dtype)           # (3, 64)
    b0t = jnp.asarray(b0, jnp.float32).reshape(HIDDEN, 1)                # biases stay f32
    bht = jnp.asarray(bh, jnp.float32).reshape(N_HID_LAYERS, HIDDEN, 1)
    boutt = jnp.asarray(bout, jnp.float32).reshape(OUT_DIM, 1)
    return w0t, b0t, wht, bht, woutt, boutt


def mlp_pbr_brdf_forward(wi, wo, normal, prepped_params, *, tb=1024,
                         chunk_w=None, max_chunks=4):
    """Fused MLPPBRBRDF.forward. wi/wo/normal: (B,3) f32. Returns (B,3) f32."""
    B = wi.shape[0]
    w0t, b0t, wht, bht, woutt, boutt = prepped_params
    mxu_dtype = w0t.dtype

    if chunk_w is None:
        chunk_w = _default_chunk_width()

    # Tile policy: minimal lane padding, tile a multiple of the MXU-filling chunk
    # width, prefer >=2 grid steps (v7x megacore sharding), cap tile at tb.
    chunks_total = _cdiv(B, chunk_w)
    cap = max(1, tb // chunk_w)
    if chunks_total > 1:
        chunks_per_tile = max(1, min(cap, _cdiv(chunks_total, 2)))
    else:
        chunks_per_tile = 1
    n_chunks = max(1, min(chunks_per_tile, max_chunks))
    while chunks_per_tile % n_chunks != 0:   # keep chunk = tb_eff / n_chunks integral
        n_chunks -= 1
    tb_eff = chunks_per_tile * chunk_w
    n_tiles = _cdiv(B, tb_eff)
    bp = n_tiles * tb_eff

    # Pack inputs into one lane-dense (9, B) slab, rows [wix,wox,wiy,woy,wiz,woz,nx,ny,nz].
    wiwo = jnp.stack([wi, wo], axis=-1).reshape(B, 6)
    dirs = jnp.concatenate([wiwo, normal], axis=1).T.astype(jnp.float32)   # (9, B)
    if bp != B:
        dirs = jnp.pad(dirs, ((0, 0), (0, bp - B)))   # zero padding stays finite downstream

    kernel = partial(mlp_brdf_kernel, n_chunks=n_chunks, mxu_dtype=mxu_dtype)

    out_t = pl.pallas_call(
        kernel,
        out_shape=jax.ShapeDtypeStruct((OUT_DIM, bp), jnp.float32),
        grid_spec=pltpu.PrefetchScalarGridSpec(
            num_scalar_prefetch=0,
            grid=(n_tiles,),
            in_specs=[
                pl.BlockSpec((9, tb_eff), lambda i: (0, i)),
                pl.BlockSpec((HIDDEN, IN_DIM), lambda i: (0, 0)),
                pl.BlockSpec((HIDDEN, 1), lambda i: (0, 0)),
                pl.BlockSpec((N_HID_LAYERS, HIDDEN, HIDDEN), lambda i: (0, 0, 0)),
                pl.BlockSpec((N_HID_LAYERS, HIDDEN, 1), lambda i: (0, 0, 0)),
                pl.BlockSpec((OUT_DIM, HIDDEN), lambda i: (0, 0)),
                pl.BlockSpec((OUT_DIM, 1), lambda i: (0, 0)),
            ],
            out_specs=pl.BlockSpec((OUT_DIM, tb_eff), lambda i: (0, i)),
        ),
        compiler_params=pltpu.CompilerParams(dimension_semantics=("parallel",)),
    )(dirs, w0t, b0t, wht, bht, woutt, boutt)

    return out_t[:, :B].T                                      # (B, 3)


def init_params(key):
    """Deterministic PyTorch-style (U[-1/sqrt(fan_in), 1/sqrt(fan_in)]) init."""
    def linear(k, fan_in, fan_out):
        k1, k2 = jax.random.split(k)
        bound = 1.0 / math.sqrt(fan_in)
        w = jax.random.uniform(k1, (fan_in, fan_out), jnp.float32, -bound, bound)
        b = jax.random.uniform(k2, (1, fan_out), jnp.float32, -bound, bound)
        return w, b

    keys = jax.random.split(key, N_HID_LAYERS + 2)
    w0, b0 = linear(keys[0], IN_DIM, HIDDEN)
    whs, bhs = [], []
    for i in range(N_HID_LAYERS):
        w, b = linear(keys[1 + i], HIDDEN, HIDDEN)
        whs.append(w)
        bhs.append(b)
    wh = jnp.stack(whs)          # (8, 64, 64)
    bh = jnp.stack(bhs)          # (8, 1, 64)
    wout, bout = linear(keys[-1], HIDDEN, OUT_DIM)
    return w0, b0, wh, bh, wout, bout


def reference_forward(wi, wo, n, params):
    """Plain-JAX reference mirroring the PyTorch forward (batch-major layout, f32)."""
    w0, b0, wh, bh, wout, bout = params
    use_z_up = jnp.abs(n[:, 2:3]) < 0.999
    up = jnp.where(use_z_up, jnp.array([0.0, 0.0, 1.0]), jnp.array([1.0, 0.0, 0.0]))
    t = jnp.cross(up, n)
    t = t * jax.lax.rsqrt(jnp.sum(t * t, -1, keepdims=True) + 1e-20)
    b = jnp.cross(n, t)
    Nmat = jnp.stack([t, b, n], axis=-1)                 # columns = (t, b, n)
    wil = jnp.einsum('bi,bij->bj', wi, Nmat)
    wol = jnp.einsum('bi,bij->bj', wo, Nmat)

    def sh(v):
        return jnp.concatenate(
            _sh16_components(v[:, 0:1], v[:, 1:2], v[:, 2:3]), axis=-1)

    x = jnp.concatenate([sh(wil), sh(wol)], axis=-1)
    h = jnp.maximum(x @ w0 + b0, 0.0)
    for i in range(N_HID_LAYERS):
        h = jnp.maximum(h @ wh[i] + bh[i], 0.0)
    return jnp.exp(h @ wout + bout)


if __name__ == "__main__":
    key = jax.random.PRNGKey(0)
    kp, kwi, kwo, kn = jax.random.split(key, 4)
    params = init_params(kp)

    B = 384   # deliberately NOT a multiple of the chunk width -> exercises padding

    def unit_dirs(k):
        v = jax.random.normal(k, (B, 3), jnp.float32)
        return v / jnp.linalg.norm(v, axis=-1, keepdims=True)

    wi = unit_dirs(kwi)
    wo = unit_dirs(kwo)
    normal = unit_dirs(kn)

    ref = reference_forward(wi, wo, normal, params)

    # 1) f32 MXU path: tight parity with the plain-JAX reference (validates ONB/SH/
    #    feature interleave/permuted w0/chunking logic exactly).
    prepped_f32 = prepare_params(params, jnp.float32)
    out_f32 = jax.block_until_ready(mlp_pbr_brdf_forward(wi, wo, normal, prepped_f32))
    assert out_f32.shape == (B, OUT_DIM)
    err_f32 = float(jnp.max(jnp.abs(out_f32 - ref)))
    assert jnp.allclose(out_f32, ref, rtol=1e-4, atol=1e-4), f"f32 max abs err {err_f32}"

    # 2) bf16 MXU path (default, fast): f32 accumulation, bf16-appropriate tolerance.
    prepped_bf16 = prepare_params(params, jnp.bfloat16)
    out_bf16 = jax.block_until_ready(mlp_pbr_brdf_forward(wi, wo, normal, prepped_bf16))
    err_bf16 = float(jnp.max(jnp.abs(out_bf16 - ref)))
    assert jnp.allclose(out_bf16, ref, rtol=5e-2, atol=5e-2), f"bf16 max abs err {err_bf16}"

    # 3) v5e-style chunking (chunk_w=128, multi-chunk, multi-tile) still correct.
    out_bf16_b = jax.block_until_ready(
        mlp_pbr_brdf_forward(wi, wo, normal, prepped_bf16, tb=512, chunk_w=128))
    err_b = float(jnp.max(jnp.abs(out_bf16_b - ref)))
    assert jnp.allclose(out_bf16_b, ref, rtol=5e-2, atol=5e-2), f"bf16/128 max abs err {err_b}"

    print("KERNEL_OK")
</pallas_src>

<mosaic_0001>
module attributes {stable_mosaic.version = 11 : i64} {
  func.func @mlp_brdf_kernel(%arg0: i32, %arg1: memref<9x256xf32, #tpu.memory_space<vmem>>, %arg2: memref<64x32xf32, #tpu.memory_space<vmem>>, %arg3: memref<64x1xf32, #tpu.memory_space<vmem>>, %arg4: memref<8x64x64xf32, #tpu.memory_space<vmem>>, %arg5: memref<8x64x1xf32, #tpu.memory_space<vmem>>, %arg6: memref<3x64xf32, #tpu.memory_space<vmem>>, %arg7: memref<3x1xf32, #tpu.memory_space<vmem>>, %arg8: memref<3x256xf32, #tpu.memory_space<vmem>>) attributes {dimension_semantics = [#tpu.dimension_semantics<parallel>], iteration_bounds = array<i64: 2>, scalar_prefetch = 0 : i64, scratch_operands = 0 : i64, tpu.core_type = #tpu.core_type<tc>, window_params = [{transform_indices = @transform_0, window_bounds = array<i64: 9, 256>}, {pipeline_mode = #tpu.pipeline_mode<synchronous>, transform_indices = @transform_1, window_bounds = array<i64: 64, 32>}, {pipeline_mode = #tpu.pipeline_mode<synchronous>, transform_indices = @transform_2, window_bounds = array<i64: 64, 1>}, {pipeline_mode = #tpu.pipeline_mode<synchronous>, transform_indices = @transform_3, window_bounds = array<i64: 8, 64, 64>}, {pipeline_mode = #tpu.pipeline_mode<synchronous>, transform_indices = @transform_4, window_bounds = array<i64: 8, 64, 1>}, {pipeline_mode = #tpu.pipeline_mode<synchronous>, transform_indices = @transform_5, window_bounds = array<i64: 3, 64>}, {pipeline_mode = #tpu.pipeline_mode<synchronous>, transform_indices = @transform_6, window_bounds = array<i64: 3, 1>}, {transform_indices = @transform_7, window_bounds = array<i64: 3, 256>}]} {
    %c0 = arith.constant 0 : index
    %c0_0 = arith.constant 0 : index
    %0 = vector.load %arg1[%c0, %c0_0] : memref<9x256xf32, #tpu.memory_space<vmem>>, vector<9x256xf32>
    %1 = vector.extract_strided_slice %0 {offsets = [0, 0], sizes = [2, 256], strides = [1, 1]} : vector<9x256xf32> to vector<2x256xf32>
    %2 = vector.extract_strided_slice %0 {offsets = [2, 0], sizes = [2, 256], strides = [1, 1]} : vector<9x256xf32> to vector<2x256xf32>
    %3 = vector.extract_strided_slice %0 {offsets = [4, 0], sizes = [2, 256], strides = [1, 1]} : vector<9x256xf32> to vector<2x256xf32>
    %4 = vector.extract_strided_slice %0 {offsets = [6, 0], sizes = [1, 256], strides = [1, 1]} : vector<9x256xf32> to vector<1x256xf32>
    %5 = vector.extract_strided_slice %0 {offsets = [7, 0], sizes = [1, 256], strides = [1, 1]} : vector<9x256xf32> to vector<1x256xf32>
    %6 = vector.extract_strided_slice %0 {offsets = [8, 0], sizes = [1, 256], strides = [1, 1]} : vector<9x256xf32> to vector<1x256xf32>
    %7 = math.absf %6 : vector<1x256xf32>
    %cst = arith.constant 9.990000e-01 : f32
    %8 = vector.broadcast %cst : f32 to vector<1x256xf32>
    %9 = arith.cmpf olt, %7, %8 : vector<1x256xf32>
    %cst_1 = arith.constant 0.000000e+00 : f32
    %10 = vector.broadcast %cst_1 : f32 to vector<1x256xf32>
    %11 = arith.subf %10, %5 : vector<1x256xf32>
    %cst_2 = arith.constant 0.000000e+00 : f32
    %12 = vector.broadcast %cst_2 : f32 to vector<1x256xf32>
    %13 = arith.select %9, %11, %12 : vector<1x256xi1>, vector<1x256xf32>
    %cst_3 = arith.constant 0.000000e+00 : f32
    %14 = vector.broadcast %cst_3 : f32 to vector<1x256xf32>
    %15 = arith.subf %14, %6 : vector<1x256xf32>
    %16 = arith.select %9, %4, %15 : vector<1x256xi1>, vector<1x256xf32>
    %cst_4 = arith.constant 0.000000e+00 : f32
    %17 = vector.broadcast %cst_4 : f32 to vector<1x256xf32>
    %18 = arith.select %9, %17, %5 : vector<1x256xi1>, vector<1x256xf32>
    %19 = arith.mulf %13, %13 : vector<1x256xf32>
    %20 = arith.mulf %16, %16 : vector<1x256xf32>
    %21 = arith.addf %19, %20 : vector<1x256xf32>
    %22 = arith.mulf %18, %18 : vector<1x256xf32>
    %23 = arith.addf %21, %22 : vector<1x256xf32>
    %cst_5 = arith.constant 9.99999968E-21 : f32
    %24 = vector.broadcast %cst_5 : f32 to vector<1x256xf32>
    %25 = arith.addf %23, %24 : vector<1x256xf32>
    %26 = math.rsqrt %25 : vector<1x256xf32>
    %27 = arith.mulf %13, %26 : vector<1x256xf32>
    %28 = arith.mulf %16, %26 : vector<1x256xf32>
    %29 = arith.mulf %18, %26 : vector<1x256xf32>
    %30 = arith.mulf %5, %29 : vector<1x256xf32>
    %31 = arith.mulf %6, %28 : vector<1x256xf32>
    %32 = arith.subf %30, %31 : vector<1x256xf32>
    %33 = arith.mulf %6, %27 : vector<1x256xf32>
    %34 = arith.mulf %4, %29 : vector<1x256xf32>
    %35 = arith.subf %33, %34 : vector<1x256xf32>
    %36 = arith.mulf %4, %28 : vector<1x256xf32>
    %37 = arith.mulf %5, %27 : vector<1x256xf32>
    %38 = arith.subf %36, %37 : vector<1x256xf32>
    %39 = vector.broadcast %27 : vector<1x256xf32> to vector<2x256xf32>
    %40 = arith.mulf %1, %39 : vector<2x256xf32>
    %41 = vector.broadcast %28 : vector<1x256xf32> to vector<2x256xf32>
    %42 = arith.mulf %2, %41 : vector<2x256xf32>
    %43 = arith.addf %40, %42 : vector<2x256xf32>
    %44 = vector.broadcast %29 : vector<1x256xf32> to vector<2x256xf32>
    %45 = arith.mulf %3, %44 : vector<2x256xf32>
    %46 = arith.addf %43, %45 : vector<2x256xf32>
    %47 = vector.broadcast %32 : vector<1x256xf32> to vector<2x256xf32>
    %48 = arith.mulf %1, %47 : vector<2x256xf32>
    %49 = vector.broadcast %35 : vector<1x256xf32> to vector<2x256xf32>
    %50 = arith.mulf %2, %49 : vector<2x256xf32>
    %51 = arith.addf %48, %50 : vector<2x256xf32>
    %52 = vector.broadcast %38 : vector<1x256xf32> to vector<2x256xf32>
    %53 = arith.mulf %3, %52 : vector<2x256xf32>
    %54 = arith.addf %51, %53 : vector<2x256xf32>
    %55 = vector.broadcast %4 : vector<1x256xf32> to vector<2x256xf32>
    %56 = arith.mulf %1, %55 : vector<2x256xf32>
    %57 = vector.broadcast %5 : vector<1x256xf32> to vector<2x256xf32>
    %58 = arith.mulf %2, %57 : vector<2x256xf32>
    %59 = arith.addf %56, %58 : vector<2x256xf32>
    %60 = vector.broadcast %6 : vector<1x256xf32> to vector<2x256xf32>
    %61 = arith.mulf %3, %60 : vector<2x256xf32>
    %62 = arith.addf %59, %61 : vector<2x256xf32>
    %63 = arith.mulf %46, %46 : vector<2x256xf32>
    %64 = arith.mulf %54, %54 : vector<2x256xf32>
    %65 = arith.mulf %62, %62 : vector<2x256xf32>
    %cst_6 = arith.constant 0.282094806 : f32
    %66 = vector.broadcast %cst_6 : f32 to vector<2x256xf32>
    %cst_7 = arith.constant 0.488602519 : f32
    %67 = vector.broadcast %cst_7 : f32 to vector<2x256xf32>
    %68 = arith.mulf %67, %54 : vector<2x256xf32>
    %cst_8 = arith.constant 0.488602519 : f32
    %69 = vector.broadcast %cst_8 : f32 to vector<2x256xf32>
    %70 = arith.mulf %69, %62 : vector<2x256xf32>
    %cst_9 = arith.constant 0.488602519 : f32
    %71 = vector.broadcast %cst_9 : f32 to vector<2x256xf32>
    %72 = arith.mulf %71, %46 : vector<2x256xf32>
    %cst_10 = arith.constant 1.09254849 : f32
    %73 = vector.broadcast %cst_10 : f32 to vector<2x256xf32>
    %74 = arith.mulf %73, %46 : vector<2x256xf32>
    %75 = arith.mulf %74, %54 : vector<2x256xf32>
    %cst_11 = arith.constant 1.09254849 : f32
    %76 = vector.broadcast %cst_11 : f32 to vector<2x256xf32>
    %77 = arith.mulf %76, %54 : vector<2x256xf32>
    %78 = arith.mulf %77, %62 : vector<2x256xf32>
    %cst_12 = arith.constant 0.946174681 : f32
    %79 = vector.broadcast %cst_12 : f32 to vector<2x256xf32>
    %80 = arith.mulf %79, %65 : vector<2x256xf32>
    %cst_13 = arith.constant 0.31539157 : f32
    %81 = vector.broadcast %cst_13 : f32 to vector<2x256xf32>
    %82 = arith.subf %80, %81 : vector<2x256xf32>
    %cst_14 = arith.constant 1.09254849 : f32
    %83 = vector.broadcast %cst_14 : f32 to vector<2x256xf32>
    %84 = arith.mulf %83, %46 : vector<2x256xf32>
    %85 = arith.mulf %84, %62 : vector<2x256xf32>
    %86 = arith.subf %63, %64 : vector<2x256xf32>
    %cst_15 = arith.constant 0.546274245 : f32
    %87 = vector.broadcast %cst_15 : f32 to vector<2x256xf32>
    %88 = arith.mulf %87, %86 : vector<2x256xf32>
    %cst_16 = arith.constant 0.590043604 : f32
    %89 = vector.broadcast %cst_16 : f32 to vector<2x256xf32>
    %90 = arith.mulf %89, %54 : vector<2x256xf32>
    %cst_17 = arith.constant 3.000000e+00 : f32
    %91 = vector.broadcast %cst_17 : f32 to vector<2x256xf32>
    %92 = arith.mulf %91, %63 : vector<2x256xf32>
    %93 = arith.subf %92, %64 : vector<2x256xf32>
    %94 = arith.mulf %90, %93 : vector<2x256xf32>
    %cst_18 = arith.constant 2.89061141 : f32
    %95 = vector.broadcast %cst_18 : f32 to vector<2x256xf32>
    %96 = arith.mulf %95, %46 : vector<2x256xf32>
    %97 = arith.mulf %96, %54 : vector<2x256xf32>
    %98 = arith.mulf %97, %62 : vector<2x256xf32>
    %cst_19 = arith.constant 0.457045794 : f32
    %99 = vector.broadcast %cst_19 : f32 to vector<2x256xf32>
    %100 = arith.mulf %99, %54 : vector<2x256xf32>
    %cst_20 = arith.constant 5.000000e+00 : f32
    %101 = vector.broadcast %cst_20 : f32 to vector<2x256xf32>
    %102 = arith.mulf %101, %65 : vector<2x256xf32>
    %cst_21 = arith.constant 1.000000e+00 : f32
    %103 = vector.broadcast %cst_21 : f32 to vector<2x256xf32>
    %104 = arith.subf %102, %103 : vector<2x256xf32>
    %105 = arith.mulf %100, %104 : vector<2x256xf32>
    %cst_22 = arith.constant 0.373176336 : f32
    %106 = vector.broadcast %cst_22 : f32 to vector<2x256xf32>
    %107 = arith.mulf %106, %62 : vector<2x256xf32>
    %cst_23 = arith.constant 5.000000e+00 : f32
    %108 = vector.broadcast %cst_23 : f32 to vector<2x256xf32>
    %109 = arith.mulf %108, %65 : vector<2x256xf32>
    %cst_24 = arith.constant 3.000000e+00 : f32
    %110 = vector.broadcast %cst_24 : f32 to vector<2x256xf32>
    %111 = arith.subf %109, %110 : vector<2x256xf32>
    %112 = arith.mulf %107, %111 : vector<2x256xf32>
    %cst_25 = arith.constant 0.457045794 : f32
    %113 = vector.broadcast %cst_25 : f32 to vector<2x256xf32>
    %114 = arith.mulf %113, %46 : vector<2x256xf32>
    %cst_26 = arith.constant 5.000000e+00 : f32
    %115 = vector.broadcast %cst_26 : f32 to vector<2x256xf32>
    %116 = arith.mulf %115, %65 : vector<2x256xf32>
    %cst_27 = arith.constant 1.000000e+00 : f32
    %117 = vector.broadcast %cst_27 : f32 to vector<2x256xf32>
    %118 = arith.subf %116, %117 : vector<2x256xf32>
    %119 = arith.mulf %114, %118 : vector<2x256xf32>
    %cst_28 = arith.constant 1.44530571 : f32
    %120 = vector.broadcast %cst_28 : f32 to vector<2x256xf32>
    %121 = arith.mulf %120, %62 : vector<2x256xf32>
    %122 = arith.subf %63, %64 : vector<2x256xf32>
    %123 = arith.mulf %121, %122 : vector<2x256xf32>
    %cst_29 = arith.constant 0.590043604 : f32
    %124 = vector.broadcast %cst_29 : f32 to vector<2x256xf32>
    %125 = arith.mulf %124, %46 : vector<2x256xf32>
    %cst_30 = arith.constant 3.000000e+00 : f32
    %126 = vector.broadcast %cst_30 : f32 to vector<2x256xf32>
    %127 = arith.mulf %126, %64 : vector<2x256xf32>
    %128 = arith.subf %63, %127 : vector<2x256xf32>
    %129 = arith.mulf %125, %128 : vector<2x256xf32>
    %130 = tpu.concatenate %66, %68, %70, %72, %75, %78, %82, %85, %88, %94, %98, %105, %112, %119, %123, %129 in 0 : vector<2x256xf32>, vector<2x256xf32>, vector<2x256xf32>, vector<2x256xf32>, vector<2x256xf32>, vector<2x256xf32>, vector<2x256xf32>, vector<2x256xf32>, vector<2x256xf32>, vector<2x256xf32>, vector<2x256xf32>, vector<2x256xf32>, vector<2x256xf32>, vector<2x256xf32>, vector<2x256xf32>, vector<2x256xf32> -> vector<32x256xf32>
    %c0_31 = arith.constant 0 : index
    %c0_32 = arith.constant 0 : index
    %131 = vector.load %arg2[%c0_31, %c0_32] : memref<64x32xf32, #tpu.memory_space<vmem>>, vector<64x32xf32>
    %c0_33 = arith.constant 0 : index
    %c0_34 = arith.constant 0 : index
    %132 = vector.load %arg3[%c0_33, %c0_34] : memref<64x1xf32, #tpu.memory_space<vmem>>, vector<64x1xf32>
    %133 = vector.shape_cast %132 : vector<64x1xf32> to vector<64x1xf32>
    %134 = vector.broadcast %133 : vector<64x1xf32> to vector<64x256xf32>
    %cst_35 = arith.constant dense<0.000000e+00> : vector<64x256xf32>
    %135 = tpu.matmul %131, %130, %cst_35 {dimension_numbers = #tpu.dot_dimension_numbers<[1], [0], [0], [1], [0, 0, 1, 1], [], []>} : vector<64x32xf32>, vector<32x256xf32>, vector<64x256xf32> -> vector<64x256xf32>
    %136 = arith.addf %135, %134 : vector<64x256xf32>
    %cst_36 = arith.constant 0.000000e+00 : f32
    %137 = vector.broadcast %cst_36 : f32 to vector<64x256xf32>
    %138 = arith.maximumf %136, %137 : vector<64x256xf32>
    %c0_37 = arith.constant 0 : index
    %c0_38 = arith.constant 0 : index
    %c0_39 = arith.constant 0 : index
    %139 = vector.load %arg4[%c0_37, %c0_38, %c0_39] : memref<8x64x64xf32, #tpu.memory_space<vmem>>, vector<1x64x64xf32>
    %140 = vector.shape_cast %139 : vector<1x64x64xf32> to vector<64x64xf32>
    %c0_40 = arith.constant 0 : index
    %c0_41 = arith.constant 0 : index
    %c0_42 = arith.constant 0 : index
    %141 = vector.load %arg5[%c0_40, %c0_41, %c0_42] : memref<8x64x1xf32, #tpu.memory_space<vmem>>, vector<1x64x1xf32>
    %142 = vector.shape_cast %141 : vector<1x64x1xf32> to vector<64x1xf32>
    %143 = vector.shape_cast %142 : vector<64x1xf32> to vector<64x1xf32>
    %144 = vector.broadcast %143 : vector<64x1xf32> to vector<64x256xf32>
    %cst_43 = arith.constant dense<0.000000e+00> : vector<64x256xf32>
    %145 = tpu.matmul %140, %138, %cst_43 {dimension_numbers = #tpu.dot_dimension_numbers<[1], [0], [0], [1], [0, 0, 1, 1], [], []>} : vector<64x64xf32>, vector<64x256xf32>, vector<64x256xf32> -> vector<64x256xf32>
    %146 = arith.addf %145, %144 : vector<64x256xf32>
    %cst_44 = arith.constant 0.000000e+00 : f32
    %147 = vector.broadcast %cst_44 : f32 to vector<64x256xf32>
    %148 = arith.maximumf %146, %147 : vector<64x256xf32>
    %c1 = arith.constant 1 : index
    %c0_45 = arith.constant 0 : index
    %c0_46 = arith.constant 0 : index
    %149 = vector.load %arg4[%c1, %c0_45, %c0_46] : memref<8x64x64xf32, #tpu.memory_space<vmem>>, vector<1x64x64xf32>
    %150 = vector.shape_cast %149 : vector<1x64x64xf32> to vector<64x64xf32>
    %c1_47 = arith.constant 1 : index
    %c0_48 = arith.constant 0 : index
    %c0_49 = arith.constant 0 : index
    %151 = vector.load %arg5[%c1_47, %c0_48, %c0_49] : memref<8x64x1xf32, #tpu.memory_space<vmem>>, vector<1x64x1xf32>
    %152 = vector.shape_cast %151 : vector<1x64x1xf32> to vector<64x1xf32>
    %153 = vector.shape_cast %152 : vector<64x1xf32> to vector<64x1xf32>
    %154 = vector.broadcast %153 : vector<64x1xf32> to vector<64x256xf32>
    %cst_50 = arith.constant dense<0.000000e+00> : vector<64x256xf32>
    %155 = tpu.matmul %150, %148, %cst_50 {dimension_numbers = #tpu.dot_dimension_numbers<[1], [0], [0], [1], [0, 0, 1, 1], [], []>} : vector<64x64xf32>, vector<64x256xf32>, vector<64x256xf32> -> vector<64x256xf32>
    %156 = arith.addf %155, %154 : vector<64x256xf32>
    %cst_51 = arith.constant 0.000000e+00 : f32
    %157 = vector.broadcast %cst_51 : f32 to vector<64x256xf32>
    %158 = arith.maximumf %156, %157 : vector<64x256xf32>
    %c2 = arith.constant 2 : index
    %c0_52 = arith.constant 0 : index
    %c0_53 = arith.constant 0 : index
    %159 = vector.load %arg4[%c2, %c0_52, %c0_53] : memref<8x64x64xf32, #tpu.memory_space<vmem>>, vector<1x64x64xf32>
    %160 = vector.shape_cast %159 : vector<1x64x64xf32> to vector<64x64xf32>
    %c2_54 = arith.constant 2 : index
    %c0_55 = arith.constant 0 : index
    %c0_56 = arith.constant 0 : index
    %161 = vector.load %arg5[%c2_54, %c0_55, %c0_56] : memref<8x64x1xf32, #tpu.memory_space<vmem>>, vector<1x64x1xf32>
    %162 = vector.shape_cast %161 : vector<1x64x1xf32> to vector<64x1xf32>
    %163 = vector.shape_cast %162 : vector<64x1xf32> to vector<64x1xf32>
    %164 = vector.broadcast %163 : vector<64x1xf32> to vector<64x256xf32>
    %cst_57 = arith.constant dense<0.000000e+00> : vector<64x256xf32>
    %165 = tpu.matmul %160, %158, %cst_57 {dimension_numbers = #tpu.dot_dimension_numbers<[1], [0], [0], [1], [0, 0, 1, 1], [], []>} : vector<64x64xf32>, vector<64x256xf32>, vector<64x256xf32> -> vector<64x256xf32>
    %166 = arith.addf %165, %164 : vector<64x256xf32>
    %cst_58 = arith.constant 0.000000e+00 : f32
    %167 = vector.broadcast %cst_58 : f32 to vector<64x256xf32>
    %168 = arith.maximumf %166, %167 : vector<64x256xf32>
    %c3 = arith.constant 3 : index
    %c0_59 = arith.constant 0 : index
    %c0_60 = arith.constant 0 : index
    %169 = vector.load %arg4[%c3, %c0_59, %c0_60] : memref<8x64x64xf32, #tpu.memory_space<vmem>>, vector<1x64x64xf32>
    %170 = vector.shape_cast %169 : vector<1x64x64xf32> to vector<64x64xf32>
    %c3_61 = arith.constant 3 : index
    %c0_62 = arith.constant 0 : index
    %c0_63 = arith.constant 0 : index
    %171 = vector.load %arg5[%c3_61, %c0_62, %c0_63] : memref<8x64x1xf32, #tpu.memory_space<vmem>>, vector<1x64x1xf32>
    %172 = vector.shape_cast %171 : vector<1x64x1xf32> to vector<64x1xf32>
    %173 = vector.shape_cast %172 : vector<64x1xf32> to vector<64x1xf32>
    %174 = vector.broadcast %173 : vector<64x1xf32> to vector<64x256xf32>
    %cst_64 = arith.constant dense<0.000000e+00> : vector<64x256xf32>
    %175 = tpu.matmul %170, %168, %cst_64 {dimension_numbers = #tpu.dot_dimension_numbers<[1], [0], [0], [1], [0, 0, 1, 1], [], []>} : vector<64x64xf32>, vector<64x256xf32>, vector<64x256xf32> -> vector<64x256xf32>
    %176 = arith.addf %175, %174 : vector<64x256xf32>
    %cst_65 = arith.constant 0.000000e+00 : f32
    %177 = vector.broadcast %cst_65 : f32 to vector<64x256xf32>
    %178 = arith.maximumf %176, %177 : vector<64x256xf32>
    %c4 = arith.constant 4 : index
    %c0_66 = arith.constant 0 : index
    %c0_67 = arith.constant 0 : index
    %179 = vector.load %arg4[%c4, %c0_66, %c0_67] : memref<8x64x64xf32, #tpu.memory_space<vmem>>, vector<1x64x64xf32>
    %180 = vector.shape_cast %179 : vector<1x64x64xf32> to vector<64x64xf32>
    %c4_68 = arith.constant 4 : index
    %c0_69 = arith.constant 0 : index
    %c0_70 = arith.constant 0 : index
    %181 = vector.load %arg5[%c4_68, %c0_69, %c0_70] : memref<8x64x1xf32, #tpu.memory_space<vmem>>, vector<1x64x1xf32>
    %182 = vector.shape_cast %181 : vector<1x64x1xf32> to vector<64x1xf32>
    %183 = vector.shape_cast %182 : vector<64x1xf32> to vector<64x1xf32>
    %184 = vector.broadcast %183 : vector<64x1xf32> to vector<64x256xf32>
    %cst_71 = arith.constant dense<0.000000e+00> : vector<64x256xf32>
    %185 = tpu.matmul %180, %178, %cst_71 {dimension_numbers = #tpu.dot_dimension_numbers<[1], [0], [0], [1], [0, 0, 1, 1], [], []>} : vector<64x64xf32>, vector<64x256xf32>, vector<64x256xf32> -> vector<64x256xf32>
    %186 = arith.addf %185, %184 : vector<64x256xf32>
    %cst_72 = arith.constant 0.000000e+00 : f32
    %187 = vector.broadcast %cst_72 : f32 to vector<64x256xf32>
    %188 = arith.maximumf %186, %187 : vector<64x256xf32>
    %c5 = arith.constant 5 : index
    %c0_73 = arith.constant 0 : index
    %c0_74 = arith.constant 0 : index
    %189 = vector.load %arg4[%c5, %c0_73, %c0_74] : memref<8x64x64xf32, #tpu.memory_space<vmem>>, vector<1x64x64xf32>
    %190 = vector.shape_cast %189 : vector<1x64x64xf32> to vector<64x64xf32>
    %c5_75 = arith.constant 5 : index
    %c0_76 = arith.constant 0 : index
    %c0_77 = arith.constant 0 : index
    %191 = vector.load %arg5[%c5_75, %c0_76, %c0_77] : memref<8x64x1xf32, #tpu.memory_space<vmem>>, vector<1x64x1xf32>
    %192 = vector.shape_cast %191 : vector<1x64x1xf32> to vector<64x1xf32>
    %193 = vector.shape_cast %192 : vector<64x1xf32> to vector<64x1xf32>
    %194 = vector.broadcast %193 : vector<64x1xf32> to vector<64x256xf32>
    %cst_78 = arith.constant dense<0.000000e+00> : vector<64x256xf32>
    %195 = tpu.matmul %190, %188, %cst_78 {dimension_numbers = #tpu.dot_dimension_numbers<[1], [0], [0], [1], [0, 0, 1, 1], [], []>} : vector<64x64xf32>, vector<64x256xf32>, vector<64x256xf32> -> vector<64x256xf32>
    %196 = arith.addf %195, %194 : vector<64x256xf32>
    %cst_79 = arith.constant 0.000000e+00 : f32
    %197 = vector.broadcast %cst_79 : f32 to vector<64x256xf32>
    %198 = arith.maximumf %196, %197 : vector<64x256xf32>
    %c6 = arith.constant 6 : index
    %c0_80 = arith.constant 0 : index
    %c0_81 = arith.constant 0 : index
    %199 = vector.load %arg4[%c6, %c0_80, %c0_81] : memref<8x64x64xf32, #tpu.memory_space<vmem>>, vector<1x64x64xf32>
    %200 = vector.shape_cast %199 : vector<1x64x64xf32> to vector<64x64xf32>
    %c6_82 = arith.constant 6 : index
    %c0_83 = arith.constant 0 : index
    %c0_84 = arith.constant 0 : index
    %201 = vector.load %arg5[%c6_82, %c0_83, %c0_84] : memref<8x64x1xf32, #tpu.memory_space<vmem>>, vector<1x64x1xf32>
    %202 = vector.shape_cast %201 : vector<1x64x1xf32> to vector<64x1xf32>
    %203 = vector.shape_cast %202 : vector<64x1xf32> to vector<64x1xf32>
    %204 = vector.broadcast %203 : vector<64x1xf32> to vector<64x256xf32>
    %cst_85 = arith.constant dense<0.000000e+00> : vector<64x256xf32>
    %205 = tpu.matmul %200, %198, %cst_85 {dimension_numbers = #tpu.dot_dimension_numbers<[1], [0], [0], [1], [0, 0, 1, 1], [], []>} : vector<64x64xf32>, vector<64x256xf32>, vector<64x256xf32> -> vector<64x256xf32>
    %206 = arith.addf %205, %204 : vector<64x256xf32>
    %cst_86 = arith.constant 0.000000e+00 : f32
    %207 = vector.broadcast %cst_86 : f32 to vector<64x256xf32>
    %208 = arith.maximumf %206, %207 : vector<64x256xf32>
    %c7 = arith.constant 7 : index
    %c0_87 = arith.constant 0 : index
    %c0_88 = arith.constant 0 : index
    %209 = vector.load %arg4[%c7, %c0_87, %c0_88] : memref<8x64x64xf32, #tpu.memory_space<vmem>>, vector<1x64x64xf32>
    %210 = vector.shape_cast %209 : vector<1x64x64xf32> to vector<64x64xf32>
    %c7_89 = arith.constant 7 : index
    %c0_90 = arith.constant 0 : index
    %c0_91 = arith.constant 0 : index
    %211 = vector.load %arg5[%c7_89, %c0_90, %c0_91] : memref<8x64x1xf32, #tpu.memory_space<vmem>>, vector<1x64x1xf32>
    %212 = vector.shape_cast %211 : vector<1x64x1xf32> to vector<64x1xf32>
    %213 = vector.shape_cast %212 : vector<64x1xf32> to vector<64x1xf32>
    %214 = vector.broadcast %213 : vector<64x1xf32> to vector<64x256xf32>
    %cst_92 = arith.constant dense<0.000000e+00> : vector<64x256xf32>
    %215 = tpu.matmul %210, %208, %cst_92 {dimension_numbers = #tpu.dot_dimension_numbers<[1], [0], [0], [1], [0, 0, 1, 1], [], []>} : vector<64x64xf32>, vector<64x256xf32>, vector<64x256xf32> -> vector<64x256xf32>
    %216 = arith.addf %215, %214 : vector<64x256xf32>
    %cst_93 = arith.constant 0.000000e+00 : f32
    %217 = vector.broadcast %cst_93 : f32 to vector<64x256xf32>
    %218 = arith.maximumf %216, %217 : vector<64x256xf32>
    %c0_94 = arith.constant 0 : index
    %c0_95 = arith.constant 0 : index
    %219 = vector.load %arg6[%c0_94, %c0_95] : memref<3x64xf32, #tpu.memory_space<vmem>>, vector<3x64xf32>
    %c0_96 = arith.constant 0 : index
    %c0_97 = arith.constant 0 : index
    %220 = vector.load %arg7[%c0_96, %c0_97] : memref<3x1xf32, #tpu.memory_space<vmem>>, vector<3x1xf32>
    %221 = vector.shape_cast %220 : vector<3x1xf32> to vector<3x1xf32>
    %222 = vector.broadcast %221 : vector<3x1xf32> to vector<3x256xf32>
    %cst_98 = arith.constant dense<0.000000e+00> : vector<3x256xf32>
    %223 = tpu.matmul %219, %218, %cst_98 {dimension_numbers = #tpu.dot_dimension_numbers<[1], [0], [0], [1], [0, 0, 1, 1], [], []>} : vector<3x64xf32>, vector<64x256xf32>, vector<3x256xf32> -> vector<3x256xf32>
    %224 = arith.addf %223, %222 : vector<3x256xf32>
    %225 = math.exp %224 : vector<3x256xf32>
    %c0_99 = arith.constant 0 : index
    %c0_100 = arith.constant 0 : index
    %226 = vector.load %arg8[%c0_99, %c0_100] : memref<3x256xf32, #tpu.memory_space<vmem>>, vector<3x256xf32>
    tpu.vector_store %arg8[%c0_99, %c0_100], %225 {strides = array<i32>} : memref<3x256xf32, #tpu.memory_space<vmem>>, vector<3x256xf32>,
    return
  }
  func.func @transform_0(%arg0: i32) -> (i32, i32) {
    %c0_i32 = arith.constant 0 : i32
    %c0_i32_0 = arith.constant 0 : i32
    return %c0_i32, %arg0 : i32, i32
  }
  func.func @transform_1(%arg0: i32) -> (i32, i32) {
    %c0_i32 = arith.constant 0 : i32
    %c0_i32_0 = arith.constant 0 : i32
    %c0_i32_1 = arith.constant 0 : i32
    return %c0_i32, %c0_i32_0 : i32, i32
  }
  func.func @transform_2(%arg0: i32) -> (i32, i32) {
    %c0_i32 = arith.constant 0 : i32
    %c0_i32_0 = arith.constant 0 : i32
    %c0_i32_1 = arith.constant 0 : i32
    return %c0_i32, %c0_i32_0 : i32, i32
  }
  func.func @transform_3(%arg0: i32) -> (i32, i32, i32) {
    %c0_i32 = arith.constant 0 : i32
    %c0_i32_0 = arith.constant 0 : i32
    %c0_i32_1 = arith.constant 0 : i32
    %c0_i32_2 = arith.constant 0 : i32
    return %c0_i32, %c0_i32_0, %c0_i32_1 : i32, i32, i32
  }
  func.func @transform_4(%arg0: i32) -> (i32, i32, i32) {
    %c0_i32 = arith.constant 0 : i32
    %c0_i32_0 = arith.constant 0 : i32
    %c0_i32_1 = arith.constant 0 : i32
    %c0_i32_2 = arith.constant 0 : i32
    return %c0_i32, %c0_i32_0, %c0_i32_1 : i32, i32, i32
  }
  func.func @transform_5(%arg0: i32) -> (i32, i32) {
    %c0_i32 = arith.constant 0 : i32
    %c0_i32_0 = arith.constant 0 : i32
    %c0_i32_1 = arith.constant 0 : i32
    return %c0_i32, %c0_i32_0 : i32, i32
  }
  func.func @transform_6(%arg0: i32) -> (i32, i32) {
    %c0_i32 = arith.constant 0 : i32
    %c0_i32_0 = arith.constant 0 : i32
    %c0_i32_1 = arith.constant 0 : i32
    return %c0_i32, %c0_i32_0 : i32, i32
  }
  func.func @transform_7(%arg0: i32) -> (i32, i32) {
    %c0_i32 = arith.constant 0 : i32
    %c0_i32_0 = arith.constant 0 : i32
    return %c0_i32, %arg0 : i32, i32
  }
}

</mosaic_0001>

<llo_original>
// kernel: tpu_custom_call.1
$region0: #{tpu_custom_call.1}
  #allocation0 [shape = 'u32[]', space=smem, size = 0x4, offset = 0x4, fixed_abs, tag = 'smem constant byte address 0x4 - core index']
  #allocation1 [shape = 'u32[144,128]{1,0:T(1,128)}', space=vmem, size = 0x12000, scoped, tag = 'internal scratch']
  %s0 = inlined_call_operand.vmem [shape: f32[9,512], index: 0, kind: input, shape index: {}]
  %s1 = inlined_call_operand.vmem [shape: f32[64,32], index: 1, kind: input, shape index: {}]
  %s2 = inlined_call_operand.vmem [shape: f32[64,1], index: 2, kind: input, shape index: {}]
  %s3 = inlined_call_operand.vmem [shape: f32[8,64,64], index: 3, kind: input, shape index: {}]
  %s4 = inlined_call_operand.vmem [shape: f32[8,64,1], index: 4, kind: input, shape index: {}]
  %s5 = inlined_call_operand.vmem [shape: f32[3,64], index: 5, kind: input, shape index: {}]
  %s6 = inlined_call_operand.vmem [shape: f32[3,1], index: 6, kind: input, shape index: {}]
  %s7 = inlined_call_operand.hbm [shape: f32[3,512], index: 7, kind: output, shape index: {}]
  %s8 = sld [smem:[#allocation0]]
  $region84: #{tpu_custom_call.1} parent=0
    _
  %s10 = ssub.s32 1, %s8
  %s11 = scalar_select 0, %s10, %s8
  $region1: #{tpu_custom_call.1} parent=0
    #allocation2 [shape = 'u8[32768]{0}', space=vmem, size = 0x8000, scoped, tag = 'input window, operand 0']
    #allocation3 [shape = 'u8[8192]{0}', space=vmem, size = 0x2000, scoped, tag = 'output window, operand 0']
    #allocation4 [shape = 's32[2]{0}', space=sflag, size = 0x8, scoped, tag = 'scoped memory for tpu_custom_call.1']
    %12 = vsyncpa [#allocation4], 0
    %s13 = scalar_lea.sflag [#allocation4], 1
    %14 = vsyncpa %s13, 0
    loop: start=0, step=1, limit=4
    $region2: #{tpu_custom_call.1} parent=1 // loop_pre_header
      _
    $region3: #{tpu_custom_call.1} parent=1 // loop_header
      %s16 = sphi 0, %s20
      %p17 = scmp.ge.s32.totalorder %s16, 4
      %s26 = sphi 0, %s28
      %s29 = sphi 0, %s26
      %s30 = sphi 0, %s29
      %s46 = sphi 0, %s30
      %s50 = sphi 0, %s50
      %s52 = sphi 0, %s50
      %s53 = sphi 0, %s52
      %s67 = sphi 0, %s53
      %s71 = sphi 0, %s71
      %s73 = sphi 0, %s71
      %s74 = sphi 0, %s73
      %s88 = sphi 0, %s74
      %s92 = sphi 0, %s92
      %s94 = sphi 0, %s92
      %s95 = sphi 0, %s94
      %s109 = sphi 0, %s95
      %s113 = sphi 0, %s113
      %s115 = sphi 0, %s113
      %s116 = sphi 0, %s115
      %s130 = sphi 0, %s116
      %s134 = sphi 0, %s134
      %s136 = sphi 0, %s134
      %s137 = sphi 0, %s136
      %s151 = sphi 0, %s137
      %s155 = sphi 0, %s155
      %s157 = sphi 0, %s155
      %s158 = sphi 0, %s157
      %s172 = sphi 0, %s158
      %s178 = sphi 0, %s180
      %s181 = sphi 0, %s178
      %s182 = sphi 0, %s181
      %s198 = sphi 0, %s182
    $region4: #{tpu_custom_call.1} parent=1 // loop_header_branch
      %19 = sbr.rel (%p17) target = $region8
    $region5: #{tpu_custom_call.1} parent=1 // loop_body
      %s21 = ssub.s32 %s16, 1
      %s22 = ssub.s32 %s16, 2
      %s23 = sadd.s32 %s16, 1
      %s24 = ssub.s32 %s16, %s23
      %p25 = scmp.eq.s32.totalorder %s24, 0
      %s27 = sadd.s32 %s26, 1
      %s28 = scalar_select %p25, %s26, %s27
      %p31 = pneg %p25
      %p32 = scmp.eq.s32.totalorder %s16, 1
      %p33 = por %p31, %p32
      %p34 = scmp.ne.s32.totalorder %s26, %s29
      %p35 = scmp.eq.s32.totalorder %s16, 0
      %p36 = por %p34, %p35
      %p37 = scmp.ne.s32.totalorder %s26, %s29
      %p38 = scmp.eq.s32.totalorder %s21, 1
      %p39 = por %p37, %p38
      %p40 = scmp.ne.s32.totalorder %s29, %s30
      %p41 = scmp.eq.s32.totalorder %s21, 0
      %p42 = por %p40, %p41
      %p43 = scmp.ne.s32.totalorder %s29, %s30
      %p44 = scmp.eq.s32.totalorder %s22, 1
      %p45 = por %p43, %p44
      %p47 = scmp.ne.s32.totalorder %s30, %s46
      %p48 = scmp.eq.s32.totalorder %s22, 0
      %p49 = por %p47, %p48
      %s51 = sadd.s32 %s50, 1
      %p54 = scmp.eq.s32.totalorder %s16, 1
      %p55 = scmp.ne.s32.totalorder %s50, %s52
      %p56 = scmp.eq.s32.totalorder %s16, 0
      %p57 = por %p55, %p56
      %p58 = scmp.ne.s32.totalorder %s50, %s52
      %p59 = scmp.eq.s32.totalorder %s21, 1
      %p60 = por %p58, %p59
      %p61 = scmp.ne.s32.totalorder %s52, %s53
      %p62 = scmp.eq.s32.totalorder %s21, 0
      %p63 = por %p61, %p62
      %p64 = scmp.ne.s32.totalorder %s52, %s53
      %p65 = scmp.eq.s32.totalorder %s22, 1
      %p66 = por %p64, %p65
      %p68 = scmp.ne.s32.totalorder %s53, %s67
      %p69 = scmp.eq.s32.totalorder %s22, 0
      %p70 = por %p68, %p69
      %s72 = sadd.s32 %s71, 1
      %p75 = scmp.eq.s32.totalorder %s16, 1
      %p76 = scmp.ne.s32.totalorder %s71, %s73
      %p77 = scmp.eq.s32.totalorder %s16, 0
      %p78 = por %p76, %p77
      %p79 = scmp.ne.s32.totalorder %s71, %s73
      %p80 = scmp.eq.s32.totalorder %s21, 1
      %p81 = por %p79, %p80
      %p82 = scmp.ne.s32.totalorder %s73, %s74
      %p83 = scmp.eq.s32.totalorder %s21, 0
      %p84 = por %p82, %p83
      %p85 = scmp.ne.s32.totalorder %s73, %s74
      %p86 = scmp.eq.s32.totalorder %s22, 1
      %p87 = por %p85, %p86
      %p89 = scmp.ne.s32.totalorder %s74, %s88
      %p90 = scmp.eq.s32.totalorder %s22, 0
      %p91 = por %p89, %p90
      %s93 = sadd.s32 %s92, 1
      %p96 = scmp.eq.s32.totalorder %s16, 1
      %p97 = scmp.ne.s32.totalorder %s92, %s94
      %p98 = scmp.eq.s32.totalorder %s16, 0
      %p99 = por %p97, %p98
      %p100 = scmp.ne.s32.totalorder %s92, %s94
      %p101 = scmp.eq.s32.totalorder %s21, 1
      %p102 = por %p100, %p101
      %p103 = scmp.ne.s32.totalorder %s94, %s95
      %p104 = scmp.eq.s32.totalorder %s21, 0
      %p105 = por %p103, %p104
      %p106 = scmp.ne.s32.totalorder %s94, %s95
      %p107 = scmp.eq.s32.totalorder %s22, 1
      %p108 = por %p106, %p107
      %p110 = scmp.ne.s32.totalorder %s95, %s109
      %p111 = scmp.eq.s32.totalorder %s22, 0
      %p112 = por %p110, %p111
      %s114 = sadd.s32 %s113, 1
      %p117 = scmp.eq.s32.totalorder %s16, 1
      %p118 = scmp.ne.s32.totalorder %s113, %s115
      %p119 = scmp.eq.s32.totalorder %s16, 0
      %p120 = por %p118, %p119
      %p121 = scmp.ne.s32.totalorder %s113, %s115
      %p122 = scmp.eq.s32.totalorder %s21, 1
      %p123 = por %p121, %p122
      %p124 = scmp.ne.s32.totalorder %s115, %s116
      %p125 = scmp.eq.s32.totalorder %s21, 0
      %p126 = por %p124, %p125
      %p127 = scmp.ne.s32.totalorder %s115, %s116
      %p128 = scmp.eq.s32.totalorder %s22, 1
      %p129 = por %p127, %p128
      %p131 = scmp.ne.s32.totalorder %s116, %s130
      %p132 = scmp.eq.s32.totalorder %s22, 0
      %p133 = por %p131, %p132
      %s135 = sadd.s32 %s134, 1
      %p138 = scmp.eq.s32.totalorder %s16, 1
      %p139 = scmp.ne.s32.totalorder %s134, %s136
      %p140 = scmp.eq.s32.totalorder %s16, 0
      %p141 = por %p139, %p140
      %p142 = scmp.ne.s32.totalorder %s134, %s136
      %p143 = scmp.eq.s32.totalorder %s21, 1
      %p144 = por %p142, %p143
      %p145 = scmp.ne.s32.totalorder %s136, %s137
      %p146 = scmp.eq.s32.totalorder %s21, 0
      %p147 = por %p145, %p146
      %p148 = scmp.ne.s32.totalorder %s136, %s137
      %p149 = scmp.eq.s32.totalorder %s22, 1
      %p150 = por %p148, %p149
      %p152 = scmp.ne.s32.totalorder %s137, %s151
      %p153 = scmp.eq.s32.totalorder %s22, 0
      %p154 = por %p152, %p153
      %s156 = sadd.s32 %s155, 1
      %p159 = scmp.eq.s32.totalorder %s16, 1
      %p160 = scmp.ne.s32.totalorder %s155, %s157
      %p161 = scmp.eq.s32.totalorder %s16, 0
      %p162 = por %p160, %p161
      %p163 = scmp.ne.s32.totalorder %s155, %s157
      %p164 = scmp.eq.s32.totalorder %s21, 1
      %p165 = por %p163, %p164
      %p166 = scmp.ne.s32.totalorder %s157, %s158
      %p167 = scmp.eq.s32.totalorder %s21, 0
      %p168 = por %p166, %p167
      %p169 = scmp.ne.s32.totalorder %s157, %s158
      %p170 = scmp.eq.s32.totalorder %s22, 1
      %p171 = por %p169, %p170
      %p173 = scmp.ne.s32.totalorder %s158, %s172
      %p174 = scmp.eq.s32.totalorder %s22, 0
      %p175 = por %p173, %p174
      %s176 = ssub.s32 %s16, %s23
      %p177 = scmp.eq.s32.totalorder %s176, 0
      %s179 = sadd.s32 %s178, 1
      %s180 = scalar_select %p177, %s178, %s179
      %p183 = pneg %p177
      %p184 = scmp.eq.s32.totalorder %s16, 1
      %p185 = por %p183, %p184
      %p186 = scmp.ne.s32.totalorder %s178, %s181
      %p187 = scmp.eq.s32.totalorder %s16, 0
      %p188 = por %p186, %p187
      %p189 = scmp.ne.s32.totalorder %s178, %s181
      %p190 = scmp.eq.s32.totalorder %s21, 1
      %p191 = por %p189, %p190
      %p192 = scmp.ne.s32.totalorder %s181, %s182
      %p193 = scmp.eq.s32.totalorder %s21, 0
      %p194 = por %p192, %p193
      %p195 = scmp.ne.s32.totalorder %s181, %s182
      %p196 = scmp.eq.s32.totalorder %s22, 1
      %p197 = por %p195, %p196
      %p199 = scmp.ne.s32.totalorder %s182, %s198
      %p200 = scmp.eq.s32.totalorder %s22, 0
      %p201 = por %p199, %p200
      %p202 = scmp.le.s32.totalorder 1, %s16
      %p203 = scmp.lt.s32.totalorder %s16, 3
      %p204 = pnand %p202, %p203
      %p205 = pneg %p204
      // Predicated region
      $region9: #{tpu_custom_call.1} parent=5 // pred_check
        _
      $region10: #{tpu_custom_call.1} parent=5 // pred_check_branch
        %207 = sbr.rel (%p204) target = $region12
      $region11: #{tpu_custom_call.1} parent=5 // pred_region
        %s208 = ssub.s32 %s16, 1
        // Predicated region
        $region13: #{tpu_custom_call.1} parent=11 // pred_check
          %p209 = pneg %p63
        $region14: #{tpu_custom_call.1} parent=11 // pred_check_branch
          %211 = sbr.rel (%p209) target = $region16
        $region15: #{tpu_custom_call.1} parent=11 // pred_region
          _
        $region16: #{tpu_custom_call.1} parent=11 // pred_fallthru
          _
        // Predicated region
        $region17: #{tpu_custom_call.1} parent=11 // pred_check
          %p212 = pneg %p84
        $region18: #{tpu_custom_call.1} parent=11 // pred_check_branch
          %214 = sbr.rel (%p212) target = $region20
        $region19: #{tpu_custom_call.1} parent=11 // pred_region
          _
        $region20: #{tpu_custom_call.1} parent=11 // pred_fallthru
          _
        // Predicated region
        $region21: #{tpu_custom_call.1} parent=11 // pred_check
          %p215 = pneg %p105
        $region22: #{tpu_custom_call.1} parent=11 // pred_check_branch
          %217 = sbr.rel (%p215) target = $region24
        $region23: #{tpu_custom_call.1} parent=11 // pred_region
          _
        $region24: #{tpu_custom_call.1} parent=11 // pred_fallthru
          _
        // Predicated region
        $region25: #{tpu_custom_call.1} parent=11 // pred_check
          %p218 = pneg %p126
        $region26: #{tpu_custom_call.1} parent=11 // pred_check_branch
          %220 = sbr.rel (%p218) target = $region28
        $region27: #{tpu_custom_call.1} parent=11 // pred_region
          _
        $region28: #{tpu_custom_call.1} parent=11 // pred_fallthru
          _
        // Predicated region
        $region29: #{tpu_custom_call.1} parent=11 // pred_check
          %p221 = pneg %p147
        $region30: #{tpu_custom_call.1} parent=11 // pred_check_branch
          %223 = sbr.rel (%p221) target = $region32
        $region31: #{tpu_custom_call.1} parent=11 // pred_region
          _
        $region32: #{tpu_custom_call.1} parent=11 // pred_fallthru
          _
        // Predicated region
        $region33: #{tpu_custom_call.1} parent=11 // pred_check
          %p224 = pneg %p168
        $region34: #{tpu_custom_call.1} parent=11 // pred_check_branch
          %226 = sbr.rel (%p224) target = $region36
        $region35: #{tpu_custom_call.1} parent=11 // pred_region
          _
        $region36: #{tpu_custom_call.1} parent=11 // pred_fallthru
          _
      $region12: #{tpu_custom_call.1} parent=5 // pred_fallthru
        _
      %p227 = scmp.lt.s32.totalorder %s16, 2
      // Predicated region
      $region37: #{tpu_custom_call.1} parent=5 // pred_check
        %p228 = pneg %p227
      $region38: #{tpu_custom_call.1} parent=5 // pred_check_branch
        %230 = sbr.rel (%p228) target = $region40
      $region39: #{tpu_custom_call.1} parent=5 // pred_region
        // Predicated region
        $region41: #{tpu_custom_call.1} parent=39 // pred_check
          %p231 = pneg %p36
        $region42: #{tpu_custom_call.1} parent=39 // pred_check_branch
          %233 = sbr.rel (%p231) target = $region44
        $region43: #{tpu_custom_call.1} parent=39 // pred_region
          %s234 = sand.u32 %s26, 1
          %s235 = sand.u32 %s26, 1
          %s236 = smul.addr %s235, 32
          %s237 = scalar_lea.vmem [#allocation2], %s236
          %s238 = smul.u32 2, %s16
          %s239 = smul.addr %s238, 8
          %s240 = scalar_lea.vmem %s0, %s239
          // Predicated region
          $region45: #{tpu_custom_call.1} parent=43 // pred_check
            _
          $region46: #{tpu_custom_call.1} parent=43 // pred_check_branch
            %242 = sbr.rel (0) target = $region48
          $region47: #{tpu_custom_call.1} parent=43 // pred_region
            // Predicated region
            $region49: #{tpu_custom_call.1} parent=47 // pred_check
              _
            $region50: #{tpu_custom_call.1} parent=47 // pred_check_branch
              %244 = sbr.rel (0) target = $region52
            $region51: #{tpu_custom_call.1} parent=47 // pred_region
              loop: start=0, step=1, limit=1
              $region53: #{tpu_custom_call.1} parent=51 // loop_pre_header
                _
              $region54: #{tpu_custom_call.1} parent=51 // loop_header
                %s246 = sphi 0, %s250
                %p247 = scmp.ge.s32.totalorder %s246, 1
                %s251 = sphi %s240, %s240
                %s252 = sphi %s237, %s237
              $region55: #{tpu_custom_call.1} parent=51 // loop_header_branch
                %249 = sbr.rel (%p247) target = $region59
              $region56: #{tpu_custom_call.1} parent=51 // loop_body
                %v253 = vld [vmem:[%s251] sm:$0xff]
                %254 = vst [vmem:[%s252] sm:$0xff] %v253
                %v255 = vld [vmem:[%s251 + $0x8] sm:$0xff]
                %256 = vst [vmem:[%s252 + $0x8] sm:$0xff] %v255
                %v257 = vld [vmem:[%s251 + $0x20] sm:$0xff]
                %258 = vst [vmem:[%s252 + $0x10] sm:$0xff] %v257
                %v259 = vld [vmem:[%s251 + $0x28] sm:$0xff]
                %260 = vst [vmem:[%s252 + $0x18] sm:$0xff] %v259
              $region57: #{tpu_custom_call.1} parent=51 // loop_footer
                %s250 = sadd.s32 1, %s246
              $region58: #{tpu_custom_call.1} parent=51 // loop_footer_branch
                %245 = sbr.rel target = $region54
              $region59: #{tpu_custom_call.1} parent=51 // loop_exit
                _
            $region52: #{tpu_custom_call.1} parent=47 // pred_fallthru
              _
            // Predicated region
            $region60: #{tpu_custom_call.1} parent=47 // pred_check
              _
            $region61: #{tpu_custom_call.1} parent=47 // pred_check_branch
              %262 = sbr.rel target = $region63
            $region62: #{tpu_custom_call.1} parent=47 // pred_region
              _
            $region63: #{tpu_custom_call.1} parent=47 // pred_fallthru
              _
          $region48: #{tpu_custom_call.1} parent=43 // pred_fallthru
            _
          %263 = vnop
        $region44: #{tpu_custom_call.1} parent=39 // pred_fallthru
          _
      $region40: #{tpu_custom_call.1} parent=5 // pred_fallthru
        _
      %p264 = scmp.le.s32.totalorder 1, %s16
      %p265 = scmp.lt.s32.totalorder %s16, 3
      %p266 = pnand %p264, %p265
      %p267 = pneg %p266
      // Predicated region
      $region64: #{tpu_custom_call.1} parent=5 // pred_check
        _
      $region65: #{tpu_custom_call.1} parent=5 // pred_check_branch
        %269 = sbr.rel (%p266) target = $region67
      $region66: #{tpu_custom_call.1} parent=5 // pred_region
        %s270 = ssub.s32 %s16, 1
        %s271 = sand.u32 %s29, 1
        %s272 = sand.u32 %s29, 1
        %s273 = smul.addr %s272, 32
        %s274 = scalar_lea.vmem [#allocation2], %s273
        // Predicated region
        $region68: #{tpu_custom_call.1} parent=66 // pred_check
          %p275 = pneg %p42
        $region69: #{tpu_custom_call.1} parent=66 // pred_check_branch
          %277 = sbr.rel (%p275) target = $region71
        $region70: #{tpu_custom_call.1} parent=66 // pred_region
          _
        $region71: #{tpu_custom_call.1} parent=66 // pred_fallthru
          _
        %s278 = sand.u32 %s29, 1
        %s279 = sand.u32 %s29, 1
        %s280 = smul.addr %s279, 32
        %s281 = scalar_lea.vmem [#allocation2], %s280
        %p282 = pneg %p42
        %p283 = pneg %p39
        %p284 = pneg %p63
        %p285 = pneg %p60
        %p286 = pneg %p84
        %p287 = pneg %p81
        %p288 = pneg %p105
        %p289 = pneg %p102
        %p290 = pneg %p126
        %p291 = pneg %p123
        %p292 = pneg %p147
        %p293 = pneg %p144
        %p294 = pneg %p168
        %p295 = pneg %p165
        %p296 = pneg %p194
        %p297 = pneg %p191
        %s298 = sand.u32 %s181, 1
        %s299 = scalar_lea.sflag [#allocation4], %s298
        %s300 = sand.u32 %s181, 1
        %s301 = smul.addr %s300, 8
        %s302 = scalar_lea.vmem [#allocation3], %s301
        %s303 = smul.u32 2, %s21
        %s304 = smul.u32 2, %s21
        %v305 = vld [vmem:[%s274] sm:$0xff]
        %v306 = vld [vmem:[%s274 + $0x8] sm:$0xff]
        %v307 = vld [vmem:[%s274 + $0x10] sm:$0x1]
        %v308 = vld [vmem:[%s274 + $0x18] sm:$0x1]
        %v309 = vand.u32 2147483647, %v307
        %v310 = vand.u32 2147483647, %v308
        %vm311 = vcmp.lt.f32.partialorder %v309, 0.999
        %vm312 = vcmp.lt.f32.partialorder %v310, 0.999
        %v313 = vsub.f32 0.0, %v305
        %v314 = vsub.f32 0.0, %v306
        %v317 = vrot.slane %v313, 7
        %v318 = vrot.slane %v314, 7
        %v321 = vsel %vm311, %v317, 0.0
        %v322 = vsel %vm312, %v318, 0.0
        %v323 = vsub.f32 0.0, %v307
        %v324 = vsub.f32 0.0, %v308
        %v327 = vrot.slane %v305, 6
        %v328 = vrot.slane %v306, 6
        %v331 = vsel %vm311, %v327, %v323
        %v332 = vsel %vm312, %v328, %v324
        %v333 = vrot.slane %v305, 7
        %v334 = vrot.slane %v306, 7
        %v337 = vsel %vm311, 0.0, %v333
        %v338 = vsel %vm312, 0.0, %v334
        %v339 = vmul.f32 %v321, %v321
        %v340 = vmul.f32 %v322, %v322
        %v341 = vmul.f32 %v331, %v331
        %v342 = vmul.f32 %v332, %v332
        %v343 = vadd.f32 %v339, %v341
        %v344 = vadd.f32 %v340, %v342
        %v345 = vmul.f32 %v337, %v337
        %v346 = vmul.f32 %v338, %v338
        %v347 = vadd.f32 %v343, %v345
        %v348 = vadd.f32 %v344, %v346
        %v349 = vadd.f32 %v347, 1e-20
        %v350 = vadd.f32 %v348, 1e-20
        %v351 = vrsqrt.pop %v349
        %v352 = vrsqrt.pop %v350
        %v353 = vmul.f32 %v321, %v351
        %v354 = vmul.f32 %v322, %v352
        %v355 = vmul.f32 %v331, %v351
        %v356 = vmul.f32 %v332, %v352
        %v357 = vmul.f32 %v337, %v351
        %v358 = vmul.f32 %v338, %v352
        %v361 = vrot.slane %v357, 1
        %v362 = vrot.slane %v358, 1
        %v365 = vmul.f32 %v305, %v361
        %v366 = vmul.f32 %v306, %v362
        %v367 = vmul.f32 %v307, %v355
        %v368 = vmul.f32 %v308, %v356
        %v371 = vrot.slane %v367, 1
        %v372 = vrot.slane %v368, 1
        %v375 = vsub.f32 %v365, %v371
        %v376 = vsub.f32 %v366, %v372
        %v377 = vmul.f32 %v307, %v353
        %v378 = vmul.f32 %v308, %v354
        %v379 = vrot.slane %v357, 2
        %v380 = vrot.slane %v358, 2
        %v383 = vmul.f32 %v305, %v379
        %v384 = vmul.f32 %v306, %v380
        %v387 = vrot.slane %v383, 6
        %v388 = vrot.slane %v384, 6
        %v391 = vsub.f32 %v377, %v387
        %v392 = vsub.f32 %v378, %v388
        %v395 = vrot.slane %v355, 2
        %v396 = vrot.slane %v356, 2
        %v399 = vmul.f32 %v305, %v395
        %v400 = vmul.f32 %v306, %v396
        %v403 = vrot.slane %v353, 1
        %v404 = vrot.slane %v354, 1
        %v407 = vmul.f32 %v305, %v403
        %v408 = vmul.f32 %v306, %v404
        %v411 = vrot.slane %v407, 1
        %v412 = vrot.slane %v408, 1
        %v415 = vsub.f32 %v399, %v411
        %v416 = vsub.f32 %v400, %v412
        %v417 = vlaneseq
        %v418 = vshrl.u32 %v417, 7
        %v419 = vsub.s32 0, %v418
        %v420 = vrot.slane %v353, %v419
        %v421 = vlaneseq
        %v422 = vshrl.u32 %v421, 7
        %v423 = vsub.s32 0, %v422
        %v424 = vrot.slane %v354, %v423
        %v425 = vmul.f32 %v305, %v420
        %v426 = vmul.f32 %v306, %v424
        %v427 = vlaneseq
        %v428 = vshrl.u32 %v427, 7
        %v429 = vsub.s32 0, %v428
        %v430 = vrot.slane %v355, %v429
        %v431 = vlaneseq
        %v432 = vshrl.u32 %v431, 7
        %v433 = vsub.s32 0, %v432
        %v434 = vrot.slane %v356, %v433
        %v435 = vmul.f32 %v305, %v430
        %v436 = vmul.f32 %v306, %v434
        %v439 = vrot.slane %v435, 2
        %v440 = vrot.slane %v436, 2
        %v443 = vadd.f32 %v425, %v439
        %v444 = vadd.f32 %v426, %v440
        %v445 = vlaneseq
        %v446 = vshrl.u32 %v445, 7
        %v447 = vsub.s32 0, %v446
        %v448 = vrot.slane %v357, %v447
        %v449 = vlaneseq
        %v450 = vshrl.u32 %v449, 7
        %v451 = vsub.s32 0, %v450
        %v452 = vrot.slane %v358, %v451
        %v453 = vmul.f32 %v305, %v448
        %v454 = vmul.f32 %v306, %v452
        %v457 = vrot.slane %v453, 4
        %v458 = vrot.slane %v454, 4
        %v461 = vadd.f32 %v443, %v457
        %v462 = vadd.f32 %v444, %v458
        %v463 = vlaneseq
        %v464 = vshrl.u32 %v463, 7
        %v465 = vsub.s32 7, %v464
        %v466 = vrot.slane %v375, %v465
        %v467 = vlaneseq
        %v468 = vshrl.u32 %v467, 7
        %v469 = vsub.s32 7, %v468
        %v470 = vrot.slane %v376, %v469
        %v471 = vmul.f32 %v305, %v466
        %v472 = vmul.f32 %v306, %v470
        %v473 = vlaneseq
        %v474 = vshrl.u32 %v473, 7
        %v475 = vsub.s32 0, %v474
        %v476 = vrot.slane %v391, %v475
        %v477 = vlaneseq
        %v478 = vshrl.u32 %v477, 7
        %v479 = vsub.s32 0, %v478
        %v480 = vrot.slane %v392, %v479
        %v481 = vmul.f32 %v305, %v476
        %v482 = vmul.f32 %v306, %v480
        %v485 = vrot.slane %v481, 2
        %v486 = vrot.slane %v482, 2
        %v489 = vadd.f32 %v471, %v485
        %v490 = vadd.f32 %v472, %v486
        %v491 = vlaneseq
        %v492 = vshrl.u32 %v491, 7
        %v493 = vsub.s32 6, %v492
        %v494 = vrot.slane %v415, %v493
        %v495 = vlaneseq
        %v496 = vshrl.u32 %v495, 7
        %v497 = vsub.s32 6, %v496
        %v498 = vrot.slane %v416, %v497
        %v499 = vmul.f32 %v305, %v494
        %v500 = vmul.f32 %v306, %v498
        %v503 = vrot.slane %v499, 4
        %v504 = vrot.slane %v500, 4
        %v507 = vadd.f32 %v489, %v503
        %v508 = vadd.f32 %v490, %v504
        %v509 = vlaneseq
        %v510 = vshrl.u32 %v509, 7
        %v511 = vsub.s32 6, %v510
        %v512 = vrot.slane %v305, %v511
        %v513 = vlaneseq
        %v514 = vshrl.u32 %v513, 7
        %v515 = vsub.s32 6, %v514
        %v516 = vrot.slane %v306, %v515
        %v517 = vmul.f32 %v305, %v512
        %v518 = vmul.f32 %v306, %v516
        %v519 = vlaneseq
        %v520 = vshrl.u32 %v519, 7
        %v521 = vsub.s32 7, %v520
        %v522 = vrot.slane %v305, %v521
        %v523 = vlaneseq
        %v524 = vshrl.u32 %v523, 7
        %v525 = vsub.s32 7, %v524
        %v526 = vrot.slane %v306, %v525
        %v527 = vmul.f32 %v305, %v522
        %v528 = vmul.f32 %v306, %v526
        %v531 = vrot.slane %v527, 2
        %v532 = vrot.slane %v528, 2
        %v535 = vadd.f32 %v517, %v531
        %v536 = vadd.f32 %v518, %v532
        %v537 = vlaneseq
        %v538 = vshrl.u32 %v537, 7
        %v539 = vsub.s32 0, %v538
        %v540 = vrot.slane %v307, %v539
        %v541 = vlaneseq
        %v542 = vshrl.u32 %v541, 7
        %v543 = vsub.s32 0, %v542
        %v544 = vrot.slane %v308, %v543
        %v545 = vmul.f32 %v305, %v540
        %v546 = vmul.f32 %v306, %v544
        %v549 = vrot.slane %v545, 4
        %v550 = vrot.slane %v546, 4
        %v553 = vadd.f32 %v535, %v549
        %v554 = vadd.f32 %v536, %v550
        %v555 = vmul.f32 %v461, %v461
        %v556 = vmul.f32 %v462, %v462
        %v557 = vmul.f32 %v507, %v507
        %v558 = vmul.f32 %v508, %v508
        %v559 = vmul.f32 %v553, %v553
        %v560 = vmul.f32 %v554, %v554
        %v561 = vmul.f32 %v507, 0.48860252
        %v562 = vmul.f32 %v508, 0.48860252
        %v563 = vmul.f32 %v553, 0.48860252
        %v564 = vmul.f32 %v554, 0.48860252
        %v565 = vmul.f32 %v461, 0.48860252
        %v566 = vmul.f32 %v462, 0.48860252
        %v567 = vmul.f32 %v461, 1.0925485
        %v568 = vmul.f32 %v462, 1.0925485
        %v569 = vmul.f32 %v567, %v507
        %v570 = vmul.f32 %v568, %v508
        %v571 = vmul.f32 %v507, 1.0925485
        %v572 = vmul.f32 %v508, 1.0925485
        %v573 = vmul.f32 %v571, %v553
        %v574 = vmul.f32 %v572, %v554
        %v575 = vmul.f32 %v559, 0.9461747
        %v576 = vmul.f32 %v560, 0.9461747
        %v577 = vsub.f32 %v575, 0.31539157
        %v578 = vsub.f32 %v576, 0.31539157
        %v579 = vmul.f32 %v567, %v553
        %v580 = vmul.f32 %v568, %v554
        %v581 = vsub.f32 %v555, %v557
        %v582 = vsub.f32 %v556, %v558
        %v583 = vmul.f32 %v581, 0.54627424
        %v584 = vmul.f32 %v582, 0.54627424
        %v585 = vmul.f32 %v507, 0.5900436
        %v586 = vmul.f32 %v508, 0.5900436
        %v587 = vmul.f32 %v555, 3.0
        %v588 = vmul.f32 %v556, 3.0
        %v589 = vsub.f32 %v587, %v557
        %v590 = vsub.f32 %v588, %v558
        %v591 = vmul.f32 %v585, %v589
        %v592 = vmul.f32 %v586, %v590
        %v593 = vmul.f32 %v461, 2.8906114
        %v594 = vmul.f32 %v462, 2.8906114
        %v595 = vmul.f32 %v593, %v507
        %v596 = vmul.f32 %v594, %v508
        %v597 = vmul.f32 %v595, %v553
        %v598 = vmul.f32 %v596, %v554
        %v599 = vmul.f32 %v507, 0.4570458
        %v600 = vmul.f32 %v508, 0.4570458
        %v601 = vmul.f32 %v559, 5.0
        %v602 = vmul.f32 %v560, 5.0
        %v603 = vsub.f32 %v601, 1.0
        %v604 = vsub.f32 %v602, 1.0
        %v605 = vmul.f32 %v599, %v603
        %v606 = vmul.f32 %v600, %v604
        %v607 = vmul.f32 %v553, 0.37317634
        %v608 = vmul.f32 %v554, 0.37317634
        %v609 = vsub.f32 %v601, 3.0
        %v610 = vsub.f32 %v602, 3.0
        %v611 = vmul.f32 %v607, %v609
        %v612 = vmul.f32 %v608, %v610
        %v613 = vmul.f32 %v461, 0.4570458
        %v614 = vmul.f32 %v462, 0.4570458
        %v615 = vmul.f32 %v613, %v603
        %v616 = vmul.f32 %v614, %v604
        %v617 = vmul.f32 %v553, 1.4453057
        %v618 = vmul.f32 %v554, 1.4453057
        %v619 = vmul.f32 %v617, %v581
        %v620 = vmul.f32 %v618, %v582
        %v621 = vmul.f32 %v461, 0.5900436
        %v622 = vmul.f32 %v462, 0.5900436
        %v623 = vmul.f32 %v557, 3.0
        %v624 = vmul.f32 %v558, 3.0
        %v625 = vsub.f32 %v555, %v623
        %v626 = vsub.f32 %v556, %v624
        %v627 = vmul.f32 %v621, %v625
        %v628 = vmul.f32 %v622, %v626
        %v631 = vrot.slane %v561, 6
        %v632 = vrot.slane %v562, 6
        %v637 = vrot.slane %v563, 4
        %v638 = vrot.slane %v564, 4
        %v643 = vrot.slane %v565, 2
        %v644 = vrot.slane %v566, 2
        %v649 = vrot.slane %v573, 6
        %v650 = vrot.slane %v574, 6
        %v655 = vrot.slane %v577, 4
        %v656 = vrot.slane %v578, 4
        %v661 = vrot.slane %v579, 2
        %v662 = vrot.slane %v580, 2
        %v667 = vrot.slane %v591, 6
        %v668 = vrot.slane %v592, 6
        %v673 = vrot.slane %v597, 4
        %v674 = vrot.slane %v598, 4
        %v679 = vrot.slane %v605, 2
        %v680 = vrot.slane %v606, 2
        %v685 = vrot.slane %v615, 6
        %v686 = vrot.slane %v616, 6
        %v691 = vrot.slane %v619, 4
        %v692 = vrot.slane %v620, 4
        %v697 = vrot.slane %v627, 2
        %v698 = vrot.slane %v628, 2
        %vm701 = vcmask 1041408
        %v702 = vsel %vm701, 0.2820948, %v631
        %v703 = vsel %vm701, 0.2820948, %v632
        %vm704 = vcmask 1043456
        %v705 = vsel %vm704, %v702, %v637
        %v706 = vsel %vm704, %v703, %v638
        %vm707 = vcmask 1045504
        %v708 = vsel %vm707, %v705, %v643
        %v709 = vsel %vm707, %v706, %v644
        %v710 = vsel %vm701, %v569, %v649
        %v711 = vsel %vm701, %v570, %v650
        %v712 = vsel %vm704, %v710, %v655
        %v713 = vsel %vm704, %v711, %v656
        %v714 = vsel %vm707, %v712, %v661
        %v715 = vsel %vm707, %v713, %v662
        %v716 = vsel %vm701, %v583, %v667
        %v717 = vsel %vm701, %v584, %v668
        %v718 = vsel %vm704, %v716, %v673
        %v719 = vsel %vm704, %v717, %v674
        %v720 = vsel %vm707, %v718, %v679
        %v721 = vsel %vm707, %v719, %v680
        %v722 = vsel %vm701, %v611, %v685
        %v723 = vsel %vm701, %v612, %v686
        %v724 = vsel %vm704, %v722, %v691
        %v725 = vsel %vm704, %v723, %v692
        %v726 = vsel %vm707, %v724, %v697
        %v727 = vsel %vm707, %v725, %v698
        %v728 = vld [vmem:[%s1] sm:$0xff]
        %v729 = vld [vmem:[%s1 + $0x8] sm:$0xff]
        %v730 = vld [vmem:[%s1 + $0x10] sm:$0xff]
        %v731 = vld [vmem:[%s1 + $0x18] sm:$0xff]
        %v732 = vld [vmem:[%s1 + $0x20] sm:$0xff]
        %v733 = vld [vmem:[%s1 + $0x28] sm:$0xff]
        %v734 = vld [vmem:[%s1 + $0x30] sm:$0xff]
        %v735 = vld [vmem:[%s1 + $0x38] sm:$0xff]
        %v736 = vld [vmem:[%s2] sm:$0xff]
        %v737 = vld [vmem:[%s2 + $0x8] sm:$0xff]
        %v738 = vld [vmem:[%s2 + $0x10] sm:$0xff]
        %v739 = vld [vmem:[%s2 + $0x18] sm:$0xff]
        %v740 = vld [vmem:[%s2 + $0x20] sm:$0xff]
        %v741 = vld [vmem:[%s2 + $0x28] sm:$0xff]
        %v742 = vld [vmem:[%s2 + $0x30] sm:$0xff]
        %v743 = vld [vmem:[%s2 + $0x38] sm:$0xff]
        %745 = vset.pattern.permute.xlu0 0
        %746 = vperm.xlu0 %745, %v736
        %v747 = vpop.permute.xlu0 %746
        %750 = vset.pattern.permute.xlu0 0
        %751 = vperm.xlu0 %750, %v737
        %v752 = vpop.permute.xlu0 %751
        %755 = vset.pattern.permute.xlu0 0
        %756 = vperm.xlu0 %755, %v738
        %v757 = vpop.permute.xlu0 %756
        %760 = vset.pattern.permute.xlu0 0
        %761 = vperm.xlu0 %760, %v739
        %v762 = vpop.permute.xlu0 %761
        %765 = vset.pattern.permute.xlu0 0
        %766 = vperm.xlu0 %765, %v740
        %v767 = vpop.permute.xlu0 %766
        %770 = vset.pattern.permute.xlu0 0
        %771 = vperm.xlu0 %770, %v741
        %v772 = vpop.permute.xlu0 %771
        %775 = vset.pattern.permute.xlu0 0
        %776 = vperm.xlu0 %775, %v742
        %v777 = vpop.permute.xlu0 %776
        %780 = vset.pattern.permute.xlu0 0
        %781 = vperm.xlu0 %780, %v743
        %v782 = vpop.permute.xlu0 %781
        %vm784 = vcmask 261120
        %v786 = vsel %vm784, %v728, 0
        %v789 = vsel %vm784, %v729, 0
        %v792 = vsel %vm784, %v730, 0
        %v795 = vsel %vm784, %v731, 0
        %v798 = vsel %vm784, %v732, 0
        %v801 = vsel %vm784, %v733, 0
        %v804 = vsel %vm784, %v734, 0
        %v807 = vsel %vm784, %v735, 0
        %809 = vmatprep.subr.mxu0 %v709
        %810 = vmatpush1.msra.mxu0 %v708
        %811 = vmatprep.subr.mxu0 %v715
        %812 = vmatpush1.msra.mxu0 %v714
        %813 = vmatprep.subr.mxu0 %v721
        %814 = vmatpush1.msra.mxu0 %v720
        %815 = vmatprep.subr.mxu0 %v727
        %816 = vmatpush1.msra.mxu0 %v726
        %817 = vmatprep.subr.mxu0 0.0
        %818 = vmatpush1.msra.mxu0 0.0
        %819 = vmatprep.subr.mxu0 0.0
        %820 = vmatpush1.msra.mxu0 0.0
        %821 = vmatprep.subr.mxu0 0.0
        %822 = vmatpush1.msra.mxu0 0.0
        %823 = vmatprep.subr.mxu0 0.0
        %824 = vmatpush1.msra.mxu0 0.0
        %825 = vmatprep.subr.mxu0 0.0
        %826 = vmatpush1.msra.mxu0 0.0
        %827 = vmatprep.subr.mxu0 0.0
        %828 = vmatpush1.msra.mxu0 0.0
        %829 = vmatprep.subr.mxu0 0.0
        %830 = vmatpush1.msra.mxu0 0.0
        %831 = vmatprep.subr.mxu0 0.0
        %832 = vmatpush1.msra.mxu0 0.0
        %833 = vmatprep.subr.mxu0 0.0
        %834 = vmatpush1.msra.mxu0 0.0
        %835 = vmatprep.subr.mxu0 0.0
        %836 = vmatpush1.msra.mxu0 0.0
        %837 = vmatprep.subr.mxu0 0.0
        %838 = vmatpush1.msra.mxu0 0.0
        %839 = vmatprep.subr.mxu0 0.0
        %840 = vmatpush1.msra.mxu0 0.0
        %841 = vmatprep.subr.mxu0 0.0
        %842 = vmatpush1.msra.mxu0 0.0
        %843 = vmatprep.subr.mxu0 0.0
        %844 = vmatpush1.msra.mxu0 0.0
        %845 = vmatprep.subr.mxu0 0.0
        %846 = vmatpush1.msra.mxu0 0.0
        %847 = vmatprep.subr.mxu0 0.0
        %848 = vmatpush1.msra.mxu0 0.0
        %849 = vmatprep.subr.mxu0 0.0
        %850 = vmatpush1.msra.mxu0 0.0
        %851 = vmatprep.subr.mxu0 0.0
        %852 = vmatpush1.msra.mxu0 0.0
        %853 = vmatprep.subr.mxu0 0.0
        %854 = vmatpush1.msra.mxu0 0.0
        %855 = vmatprep.subr.mxu0 0.0
        %856 = vmatpush1.msra.mxu0 0.0
        %857 = vmatprep.subr.mxu0 0.0
        %858 = vmatpush1.msra.mxu0 0.0
        %859 = vmatprep.subr.mxu0 0.0
        %860 = vmatpush1.msra.mxu0 0.0
        %861 = vmatprep.subr.mxu0 0.0
        %862 = vmatpush1.msra.mxu0 0.0
        %863 = vmatprep.subr.mxu0 0.0
        %864 = vmatpush1.msra.mxu0 0.0
        %865 = vmatprep.subr.mxu0 0.0
        %866 = vmatpush1.msra.mxu0 0.0
        %867 = vmatprep.subr.mxu0 0.0
        %868 = vmatpush1.msra.mxu0 0.0
        %869 = vmatprep.subr.mxu0 0.0
        %870 = vmatpush1.msra.mxu0 0.0
        %871 = vmatprep.subr.mxu0 0.0
        %872 = vmatpush1.msra.mxu0 0.0
        %873 = vmatprep.mubr.f32.mxu0 0.0
        %874 = vmatmul.mubr.f32.gmra.mrb[0].mxu0 %v786
        %v875 = vpop.f32.mrb[0].mxu0
        %v876 = vadd.f32 %v747, %v875
        %v877 = vpop.f32.mrb[0].mxu0
        %v878 = vadd.f32 %v747, %v877
        %879 = vmatprep.mubr.f32.mxu0 0.0
        %880 = vmatmul.mubr.f32.gmra.mrb[0].mxu0 %v789
        %v881 = vpop.f32.mrb[0].mxu0
        %v882 = vadd.f32 %v752, %v881
        %v883 = vpop.f32.mrb[0].mxu0
        %v884 = vadd.f32 %v752, %v883
        %885 = vmatprep.mubr.f32.mxu0 0.0
        %886 = vmatmul.mubr.f32.gmra.mrb[0].mxu0 %v792
        %v887 = vpop.f32.mrb[0].mxu0
        %v888 = vadd.f32 %v757, %v887
        %v889 = vpop.f32.mrb[0].mxu0
        %v890 = vadd.f32 %v757, %v889
        %891 = vmatprep.mubr.f32.mxu0 0.0
        %892 = vmatmul.mubr.f32.gmra.mrb[0].mxu0 %v795
        %v893 = vpop.f32.mrb[0].mxu0
        %v894 = vadd.f32 %v762, %v893
        %v895 = vpop.f32.mrb[0].mxu0
        %v896 = vadd.f32 %v762, %v895
        %897 = vmatprep.mubr.f32.mxu0 0.0
        %898 = vmatmul.mubr.f32.gmra.mrb[0].mxu0 %v798
        %v899 = vpop.f32.mrb[0].mxu0
        %v900 = vadd.f32 %v767, %v899
        %v901 = vpop.f32.mrb[0].mxu0
        %v902 = vadd.f32 %v767, %v901
        %903 = vmatprep.mubr.f32.mxu0 0.0
        %904 = vmatmul.mubr.f32.gmra.mrb[0].mxu0 %v801
        %v905 = vpop.f32.mrb[0].mxu0
        %v906 = vadd.f32 %v772, %v905
        %v907 = vpop.f32.mrb[0].mxu0
        %v908 = vadd.f32 %v772, %v907
        %909 = vmatprep.mubr.f32.mxu0 0.0
        %910 = vmatmul.mubr.f32.gmra.mrb[0].mxu0 %v804
        %v911 = vpop.f32.mrb[0].mxu0
        %v912 = vadd.f32 %v777, %v911
        %v913 = vpop.f32.mrb[0].mxu0
        %v914 = vadd.f32 %v777, %v913
        %915 = vmatprep.mubr.f32.mxu0 0.0
        %916 = vmatmul.mubr.f32.gmra.mrb[0].mxu0 %v807
        %v917 = vpop.f32.mrb[0].mxu0
        %v918 = vadd.f32 %v782, %v917
        %v919 = vpop.f32.mrb[0].mxu0
        %v920 = vadd.f32 %v782, %v919
        %921 = vdwg.mxu0
        %v922 = vmax.f32 %v876, 0.0
        %v923 = vmax.f32 %v878, 0.0
        %v924 = vmax.f32 %v882, 0.0
        %v925 = vmax.f32 %v884, 0.0
        %v926 = vmax.f32 %v888, 0.0
        %v927 = vmax.f32 %v890, 0.0
        %v928 = vmax.f32 %v894, 0.0
        %v929 = vmax.f32 %v896, 0.0
        %v930 = vmax.f32 %v900, 0.0
        %v931 = vmax.f32 %v902, 0.0
        %v932 = vmax.f32 %v906, 0.0
        %v933 = vmax.f32 %v908, 0.0
        %v934 = vmax.f32 %v912, 0.0
        %v935 = vmax.f32 %v914, 0.0
        %v936 = vmax.f32 %v918, 0.0
        %v937 = vmax.f32 %v920, 0.0
        %v938 = vld [vmem:[%s3] sm:$0xff]
        %v939 = vld [vmem:[%s3 + $0x8] sm:$0xff]
        %v940 = vld [vmem:[%s3 + $0x10] sm:$0xff]
        %v941 = vld [vmem:[%s3 + $0x18] sm:$0xff]
        %v942 = vld [vmem:[%s3 + $0x20] sm:$0xff]
        %v943 = vld [vmem:[%s3 + $0x28] sm:$0xff]
        %v944 = vld [vmem:[%s3 + $0x30] sm:$0xff]
        %v945 = vld [vmem:[%s3 + $0x38] sm:$0xff]
        %v946 = vld [vmem:[%s4] sm:$0xff]
        %v947 = vld [vmem:[%s4 + $0x8] sm:$0xff]
        %v948 = vld [vmem:[%s4 + $0x10] sm:$0xff]
        %v949 = vld [vmem:[%s4 + $0x18] sm:$0xff]
        %v950 = vld [vmem:[%s4 + $0x20] sm:$0xff]
        %v951 = vld [vmem:[%s4 + $0x28] sm:$0xff]
        %v952 = vld [vmem:[%s4 + $0x30] sm:$0xff]
        %v953 = vld [vmem:[%s4 + $0x38] sm:$0xff]
        %955 = vset.pattern.permute.xlu0 0
        %956 = vperm.xlu0 %955, %v946
        %v957 = vpop.permute.xlu0 %956
        %960 = vset.pattern.permute.xlu0 0
        %961 = vperm.xlu0 %960, %v947
        %v962 = vpop.permute.xlu0 %961
        %965 = vset.pattern.permute.xlu0 0
        %966 = vperm.xlu0 %965, %v948
        %v967 = vpop.permute.xlu0 %966
        %970 = vset.pattern.permute.xlu0 0
        %971 = vperm.xlu0 %970, %v949
        %v972 = vpop.permute.xlu0 %971
        %975 = vset.pattern.permute.xlu0 0
        %976 = vperm.xlu0 %975, %v950
        %v977 = vpop.permute.xlu0 %976
        %980 = vset.pattern.permute.xlu0 0
        %981 = vperm.xlu0 %980, %v951
        %v982 = vpop.permute.xlu0 %981
        %985 = vset.pattern.permute.xlu0 0
        %986 = vperm.xlu0 %985, %v952
        %v987 = vpop.permute.xlu0 %986
        %990 = vset.pattern.permute.xlu0 0
        %991 = vperm.xlu0 %990, %v953
        %v992 = vpop.permute.xlu0 %991
        %vm994 = vcmask 523264
        %v996 = vsel %vm994, %v938, 0
        %v999 = vsel %vm994, %v939, 0
        %v1002 = vsel %vm994, %v940, 0
        %v1005 = vsel %vm994, %v941, 0
        %v1008 = vsel %vm994, %v942, 0
        %v1011 = vsel %vm994, %v943, 0
        %v1014 = vsel %vm994, %v944, 0
        %v1017 = vsel %vm994, %v945, 0
        %1019 = vmatprep.subr.mxu0 %v923
        %1020 = vmatpush1.msra.mxu0 %v922
        %1021 = vmatprep.subr.mxu0 %v925
        %1022 = vmatpush1.msra.mxu0 %v924
        %1023 = vmatprep.subr.mxu0 %v927
        %1024 = vmatpush1.msra.mxu0 %v926
        %1025 = vmatprep.subr.mxu0 %v929
        %1026 = vmatpush1.msra.mxu0 %v928
        %1027 = vmatprep.subr.mxu0 %v931
        %1028 = vmatpush1.msra.mxu0 %v930
        %1029 = vmatprep.subr.mxu0 %v933
        %1030 = vmatpush1.msra.mxu0 %v932
        %1031 = vmatprep.subr.mxu0 %v935
        %1032 = vmatpush1.msra.mxu0 %v934
        %1033 = vmatprep.subr.mxu0 %v937
        %1034 = vmatpush1.msra.mxu0 %v936
        %1035 = vmatprep.subr.mxu0 0.0
        %1036 = vmatpush1.msra.mxu0 0.0
        %1037 = vmatprep.subr.mxu0 0.0
        %1038 = vmatpush1.msra.mxu0 0.0
        %1039 = vmatprep.subr.mxu0 0.0
        %1040 = vmatpush1.msra.mxu0 0.0
        %1041 = vmatprep.subr.mxu0 0.0
        %1042 = vmatpush1.msra.mxu0 0.0
        %1043 = vmatprep.subr.mxu0 0.0
        %1044 = vmatpush1.msra.mxu0 0.0
        %1045 = vmatprep.subr.mxu0 0.0
        %1046 = vmatpush1.msra.mxu0 0.0
        %1047 = vmatprep.subr.mxu0 0.0
        %1048 = vmatpush1.msra.mxu0 0.0
        %1049 = vmatprep.subr.mxu0 0.0
        %1050 = vmatpush1.msra.mxu0 0.0
        %1051 = vmatprep.subr.mxu0 0.0
        %1052 = vmatpush1.msra.mxu0 0.0
        %1053 = vmatprep.subr.mxu0 0.0
        %1054 = vmatpush1.msra.mxu0 0.0
        %1055 = vmatprep.subr.mxu0 0.0
        %1056 = vmatpush1.msra.mxu0 0.0
        %1057 = vmatprep.subr.mxu0 0.0
        %1058 = vmatpush1.msra.mxu0 0.0
        %1059 = vmatprep.subr.mxu0 0.0
        %1060 = vmatpush1.msra.mxu0 0.0
        %1061 = vmatprep.subr.mxu0 0.0
        %1062 = vmatpush1.msra.mxu0 0.0
        %1063 = vmatprep.subr.mxu0 0.0
        %1064 = vmatpush1.msra.mxu0 0.0
        %1065 = vmatprep.subr.mxu0 0.0
        %1066 = vmatpush1.msra.mxu0 0.0
        %1067 = vmatprep.subr.mxu0 0.0
        %1068 = vmatpush1.msra.mxu0 0.0
        %1069 = vmatprep.subr.mxu0 0.0
        %1070 = vmatpush1.msra.mxu0 0.0
        %1071 = vmatprep.subr.mxu0 0.0
        %1072 = vmatpush1.msra.mxu0 0.0
        %1073 = vmatprep.subr.mxu0 0.0
        %1074 = vmatpush1.msra.mxu0 0.0
        %1075 = vmatprep.subr.mxu0 0.0
        %1076 = vmatpush1.msra.mxu0 0.0
        %1077 = vmatprep.subr.mxu0 0.0
        %1078 = vmatpush1.msra.mxu0 0.0
        %1079 = vmatprep.subr.mxu0 0.0
        %1080 = vmatpush1.msra.mxu0 0.0
        %1081 = vmatprep.subr.mxu0 0.0
        %1082 = vmatpush1.msra.mxu0 0.0
        %1083 = vmatprep.mubr.f32.mxu0 0.0
        %1084 = vmatmul.mubr.f32.gmra.mrb[0].mxu0 %v996
        %v1085 = vpop.f32.mrb[0].mxu0
        %v1086 = vadd.f32 %v957, %v1085
        %v1087 = vpop.f32.mrb[0].mxu0
        %v1088 = vadd.f32 %v957, %v1087
        %1089 = vmatprep.mubr.f32.mxu0 0.0
        %1090 = vmatmul.mubr.f32.gmra.mrb[0].mxu0 %v999
        %v1091 = vpop.f32.mrb[0].mxu0
        %v1092 = vadd.f32 %v962, %v1091
        %v1093 = vpop.f32.mrb[0].mxu0
        %v1094 = vadd.f32 %v962, %v1093
        %1095 = vmatprep.mubr.f32.mxu0 0.0
        %1096 = vmatmul.mubr.f32.gmra.mrb[0].mxu0 %v1002
        %v1097 = vpop.f32.mrb[0].mxu0
        %v1098 = vadd.f32 %v967, %v1097
        %v1099 = vpop.f32.mrb[0].mxu0
        %v1100 = vadd.f32 %v967, %v1099
        %1101 = vmatprep.mubr.f32.mxu0 0.0
        %1102 = vmatmul.mubr.f32.gmra.mrb[0].mxu0 %v1005
        %v1103 = vpop.f32.mrb[0].mxu0
        %v1104 = vadd.f32 %v972, %v1103
        %v1105 = vpop.f32.mrb[0].mxu0
        %v1106 = vadd.f32 %v972, %v1105
        %1107 = vmatprep.mubr.f32.mxu0 0.0
        %1108 = vmatmul.mubr.f32.gmra.mrb[0].mxu0 %v1008
        %v1109 = vpop.f32.mrb[0].mxu0
        %v1110 = vadd.f32 %v977, %v1109
        %v1111 = vpop.f32.mrb[0].mxu0
        %v1112 = vadd.f32 %v977, %v1111
        %1113 = vmatprep.mubr.f32.mxu0 0.0
        %1114 = vmatmul.mubr.f32.gmra.mrb[0].mxu0 %v1011
        %v1115 = vpop.f32.mrb[0].mxu0
        %v1116 = vadd.f32 %v982, %v1115
        %v1117 = vpop.f32.mrb[0].mxu0
        %v1118 = vadd.f32 %v982, %v1117
        %1119 = vmatprep.mubr.f32.mxu0 0.0
        %1120 = vmatmul.mubr.f32.gmra.mrb[0].mxu0 %v1014
        %v1121 = vpop.f32.mrb[0].mxu0
        %v1122 = vadd.f32 %v987, %v1121
        %v1123 = vpop.f32.mrb[0].mxu0
        %v1124 = vadd.f32 %v987, %v1123
        %1125 = vmatprep.mubr.f32.mxu0 0.0
        %1126 = vmatmul.mubr.f32.gmra.mrb[0].mxu0 %v1017
        %v1127 = vpop.f32.mrb[0].mxu0
        %v1128 = vadd.f32 %v992, %v1127
        %v1129 = vpop.f32.mrb[0].mxu0
        %v1130 = vadd.f32 %v992, %v1129
        %1131 = vdwg.mxu0
        %v1132 = vmax.f32 %v1086, 0.0
        %v1133 = vmax.f32 %v1088, 0.0
        %v1134 = vmax.f32 %v1092, 0.0
        %v1135 = vmax.f32 %v1094, 0.0
        %v1136 = vmax.f32 %v1098, 0.0
        %v1137 = vmax.f32 %v1100, 0.0
        %v1138 = vmax.f32 %v1104, 0.0
        %v1139 = vmax.f32 %v1106, 0.0
        %v1140 = vmax.f32 %v1110, 0.0
        %v1141 = vmax.f32 %v1112, 0.0
        %v1142 = vmax.f32 %v1116, 0.0
        %v1143 = vmax.f32 %v1118, 0.0
        %v1144 = vmax.f32 %v1122, 0.0
        %v1145 = vmax.f32 %v1124, 0.0
        %v1146 = vmax.f32 %v1128, 0.0
        %v1147 = vmax.f32 %v1130, 0.0
        %s1148 = scalar_lea.vmem %s3, 64
        %v1149 = vld [vmem:[%s1148] sm:$0xff]
        %v1150 = vld [vmem:[%s1148 + $0x8] sm:$0xff]
        %v1151 = vld [vmem:[%s1148 + $0x10] sm:$0xff]
        %v1152 = vld [vmem:[%s1148 + $0x18] sm:$0xff]
        %v1153 = vld [vmem:[%s1148 + $0x20] sm:$0xff]
        %v1154 = vld [vmem:[%s1148 + $0x28] sm:$0xff]
        %v1155 = vld [vmem:[%s1148 + $0x30] sm:$0xff]
        %v1156 = vld [vmem:[%s1148 + $0x38] sm:$0xff]
        %s1157 = scalar_lea.vmem %s4, 64
        %v1158 = vld [vmem:[%s1157] sm:$0xff]
        %v1159 = vld [vmem:[%s1157 + $0x8] sm:$0xff]
        %v1160 = vld [vmem:[%s1157 + $0x10] sm:$0xff]
        %v1161 = vld [vmem:[%s1157 + $0x18] sm:$0xff]
        %v1162 = vld [vmem:[%s1157 + $0x20] sm:$0xff]
        %v1163 = vld [vmem:[%s1157 + $0x28] sm:$0xff]
        %v1164 = vld [vmem:[%s1157 + $0x30] sm:$0xff]
        %v1165 = vld [vmem:[%s1157 + $0x38] sm:$0xff]
        %1167 = vset.pattern.permute.xlu0 0
        %1168 = vperm.xlu0 %1167, %v1158
        %v1169 = vpop.permute.xlu0 %1168
        %1172 = vset.pattern.permute.xlu0 0
        %1173 = vperm.xlu0 %1172, %v1159
        %v1174 = vpop.permute.xlu0 %1173
        %1177 = vset.pattern.permute.xlu0 0
        %1178 = vperm.xlu0 %1177, %v1160
        %v1179 = vpop.permute.xlu0 %1178
        %1182 = vset.pattern.permute.xlu0 0
        %1183 = vperm.xlu0 %1182, %v1161
        %v1184 = vpop.permute.xlu0 %1183
        %1187 = vset.pattern.permute.xlu0 0
        %1188 = vperm.xlu0 %1187, %v1162
        %v1189 = vpop.permute.xlu0 %1188
        %1192 = vset.pattern.permute.xlu0 0
        %1193 = vperm.xlu0 %1192, %v1163
        %v1194 = vpop.permute.xlu0 %1193
        %1197 = vset.pattern.permute.xlu0 0
        %1198 = vperm.xlu0 %1197, %v1164
        %v1199 = vpop.permute.xlu0 %1198
        %1202 = vset.pattern.permute.xlu0 0
        %1203 = vperm.xlu0 %1202, %v1165
        %v1204 = vpop.permute.xlu0 %1203
        %v1207 = vsel %vm994, %v1149, 0
        %v1210 = vsel %vm994, %v1150, 0
        %v1213 = vsel %vm994, %v1151, 0
        %v1216 = vsel %vm994, %v1152, 0
        %v1219 = vsel %vm994, %v1153, 0
        %v1222 = vsel %vm994, %v1154, 0
        %v1225 = vsel %vm994, %v1155, 0
        %v1228 = vsel %vm994, %v1156, 0
        %1230 = vmatprep.subr.mxu0 %v1133
        %1231 = vmatpush1.msra.mxu0 %v1132
        %1232 = vmatprep.subr.mxu0 %v1135
        %1233 = vmatpush1.msra.mxu0 %v1134
        %1234 = vmatprep.subr.mxu0 %v1137
        %1235 = vmatpush1.msra.mxu0 %v1136
        %1236 = vmatprep.subr.mxu0 %v1139
        %1237 = vmatpush1.msra.mxu0 %v1138
        %1238 = vmatprep.subr.mxu0 %v1141
        %1239 = vmatpush1.msra.mxu0 %v1140
        %1240 = vmatprep.subr.mxu0 %v1143
        %1241 = vmatpush1.msra.mxu0 %v1142
        %1242 = vmatprep.subr.mxu0 %v1145
        %1243 = vmatpush1.msra.mxu0 %v1144
        %1244 = vmatprep.subr.mxu0 %v1147
        %1245 = vmatpush1.msra.mxu0 %v1146
        %1246 = vmatprep.subr.mxu0 0.0
        %1247 = vmatpush1.msra.mxu0 0.0
        %1248 = vmatprep.subr.mxu0 0.0
        %1249 = vmatpush1.msra.mxu0 0.0
        %1250 = vmatprep.subr.mxu0 0.0
        %1251 = vmatpush1.msra.mxu0 0.0
        %1252 = vmatprep.subr.mxu0 0.0
        %1253 = vmatpush1.msra.mxu0 0.0
        %1254 = vmatprep.subr.mxu0 0.0
        %1255 = vmatpush1.msra.mxu0 0.0
        %1256 = vmatprep.subr.mxu0 0.0
        %1257 = vmatpush1.msra.mxu0 0.0
        %1258 = vmatprep.subr.mxu0 0.0
        %1259 = vmatpush1.msra.mxu0 0.0
        %1260 = vmatprep.subr.mxu0 0.0
        %1261 = vmatpush1.msra.mxu0 0.0
        %1262 = vmatprep.subr.mxu0 0.0
        %1263 = vmatpush1.msra.mxu0 0.0
        %1264 = vmatprep.subr.mxu0 0.0
        %1265 = vmatpush1.msra.mxu0 0.0
        %1266 = vmatprep.subr.mxu0 0.0
        %1267 = vmatpush1.msra.mxu0 0.0
        %1268 = vmatprep.subr.mxu0 0.0
        %1269 = vmatpush1.msra.mxu0 0.0
        %1270 = vmatprep.subr.mxu0 0.0
        %1271 = vmatpush1.msra.mxu0 0.0
        %1272 = vmatprep.subr.mxu0 0.0
        %1273 = vmatpush1.msra.mxu0 0.0
        %1274 = vmatprep.subr.mxu0 0.0
        %1275 = vmatpush1.msra.mxu0 0.0
        %1276 = vmatprep.subr.mxu0 0.0
        %1277 = vmatpush1.msra.mxu0 0.0
        %1278 = vmatprep.subr.mxu0 0.0
        %1279 = vmatpush1.msra.mxu0 0.0
        %1280 = vmatprep.subr.mxu0 0.0
        %1281 = vmatpush1.msra.mxu0 0.0
        %1282 = vmatprep.subr.mxu0 0.0
        %1283 = vmatpush1.msra.mxu0 0.0
        %1284 = vmatprep.subr.mxu0 0.0
        %1285 = vmatpush1.msra.mxu0 0.0
        %1286 = vmatprep.subr.mxu0 0.0
        %1287 = vmatpush1.msra.mxu0 0.0
        %1288 = vmatprep.subr.mxu0 0.0
        %1289 = vmatpush1.msra.mxu0 0.0
        %1290 = vmatprep.subr.mxu0 0.0
        %1291 = vmatpush1.msra.mxu0 0.0
        %1292 = vmatprep.subr.mxu0 0.0
        %1293 = vmatpush1.msra.mxu0 0.0
        %1294 = vmatprep.mubr.f32.mxu0 0.0
        %1295 = vmatmul.mubr.f32.gmra.mrb[0].mxu0 %v1207
        %v1296 = vpop.f32.mrb[0].mxu0
        %v1297 = vadd.f32 %v1169, %v1296
        %v1298 = vpop.f32.mrb[0].mxu0
        %v1299 = vadd.f32 %v1169, %v1298
        %1300 = vmatprep.mubr.f32.mxu0 0.0
        %1301 = vmatmul.mubr.f32.gmra.mrb[0].mxu0 %v1210
        %v1302 = vpop.f32.mrb[0].mxu0
        %v1303 = vadd.f32 %v1174, %v1302
        %v1304 = vpop.f32.mrb[0].mxu0
        %v1305 = vadd.f32 %v1174, %v1304
        %1306 = vmatprep.mubr.f32.mxu0 0.0
        %1307 = vmatmul.mubr.f32.gmra.mrb[0].mxu0 %v1213
        %v1308 = vpop.f32.mrb[0].mxu0
        %v1309 = vadd.f32 %v1179, %v1308
        %v1310 = vpop.f32.mrb[0].mxu0
        %v1311 = vadd.f32 %v1179, %v1310
        %1312 = vmatprep.mubr.f32.mxu0 0.0
        %1313 = vmatmul.mubr.f32.gmra.mrb[0].mxu0 %v1216
        %v1314 = vpop.f32.mrb[0].mxu0
        %v1315 = vadd.f32 %v1184, %v1314
        %v1316 = vpop.f32.mrb[0].mxu0
        %v1317 = vadd.f32 %v1184, %v1316
        %1318 = vmatprep.mubr.f32.mxu0 0.0
        %1319 = vmatmul.mubr.f32.gmra.mrb[0].mxu0 %v1219
        %v1320 = vpop.f32.mrb[0].mxu0
        %v1321 = vadd.f32 %v1189, %v1320
        %v1322 = vpop.f32.mrb[0].mxu0
        %v1323 = vadd.f32 %v1189, %v1322
        %1324 = vmatprep.mubr.f32.mxu0 0.0
        %1325 = vmatmul.mubr.f32.gmra.mrb[0].mxu0 %v1222
        %v1326 = vpop.f32.mrb[0].mxu0
        %v1327 = vadd.f32 %v1194, %v1326
        %v1328 = vpop.f32.mrb[0].mxu0
        %v1329 = vadd.f32 %v1194, %v1328
        %1330 = vmatprep.mubr.f32.mxu0 0.0
        %1331 = vmatmul.mubr.f32.gmra.mrb[0].mxu0 %v1225
        %v1332 = vpop.f32.mrb[0].mxu0
        %v1333 = vadd.f32 %v1199, %v1332
        %v1334 = vpop.f32.mrb[0].mxu0
        %v1335 = vadd.f32 %v1199, %v1334
        %1336 = vmatprep.mubr.f32.mxu0 0.0
        %1337 = vmatmul.mubr.f32.gmra.mrb[0].mxu0 %v1228
        %v1338 = vpop.f32.mrb[0].mxu0
        %v1339 = vadd.f32 %v1204, %v1338
        %v1340 = vpop.f32.mrb[0].mxu0
        %v1341 = vadd.f32 %v1204, %v1340
        %1342 = vdwg.mxu0
        %v1343 = vmax.f32 %v1297, 0.0
        %v1344 = vmax.f32 %v1299, 0.0
        %v1345 = vmax.f32 %v1303, 0.0
        %v1346 = vmax.f32 %v1305, 0.0
        %v1347 = vmax.f32 %v1309, 0.0
        %v1348 = vmax.f32 %v1311, 0.0
        %v1349 = vmax.f32 %v1315, 0.0
        %v1350 = vmax.f32 %v1317, 0.0
        %v1351 = vmax.f32 %v1321, 0.0
        %v1352 = vmax.f32 %v1323, 0.0
        %v1353 = vmax.f32 %v1327, 0.0
        %v1354 = vmax.f32 %v1329, 0.0
        %v1355 = vmax.f32 %v1333, 0.0
        %v1356 = vmax.f32 %v1335, 0.0
        %v1357 = vmax.f32 %v1339, 0.0
        %v1358 = vmax.f32 %v1341, 0.0
        %s1359 = scalar_lea.vmem %s3, 128
        %v1360 = vld [vmem:[%s1359] sm:$0xff]
        %v1361 = vld [vmem:[%s1359 + $0x8] sm:$0xff]
        %v1362 = vld [vmem:[%s1359 + $0x10] sm:$0xff]
        %v1363 = vld [vmem:[%s1359 + $0x18] sm:$0xff]
        %v1364 = vld [vmem:[%s1359 + $0x20] sm:$0xff]
        %v1365 = vld [vmem:[%s1359 + $0x28] sm:$0xff]
        %v1366 = vld [vmem:[%s1359 + $0x30] sm:$0xff]
        %v1367 = vld [vmem:[%s1359 + $0x38] sm:$0xff]
        %s1368 = scalar_lea.vmem %s4, 128
        %v1369 = vld [vmem:[%s1368] sm:$0xff]
        %v1370 = vld [vmem:[%s1368 + $0x8] sm:$0xff]
        %v1371 = vld [vmem:[%s1368 + $0x10] sm:$0xff]
        %v1372 = vld [vmem:[%s1368 + $0x18] sm:$0xff]
        %v1373 = vld [vmem:[%s1368 + $0x20] sm:$0xff]
        %v1374 = vld [vmem:[%s1368 + $0x28] sm:$0xff]
        %v1375 = vld [vmem:[%s1368 + $0x30] sm:$0xff]
        %v1376 = vld [vmem:[%s1368 + $0x38] sm:$0xff]
        %1378 = vset.pattern.permute.xlu0 0
        %1379 = vperm.xlu0 %1378, %v1369
        %v1380 = vpop.permute.xlu0 %1379
        %1383 = vset.pattern.permute.xlu0 0
        %1384 = vperm.xlu0 %1383, %v1370
        %v1385 = vpop.permute.xlu0 %1384
        %1388 = vset.pattern.permute.xlu0 0
        %1389 = vperm.xlu0 %1388, %v1371
        %v1390 = vpop.permute.xlu0 %1389
        %1393 = vset.pattern.permute.xlu0 0
        %1394 = vperm.xlu0 %1393, %v1372
        %v1395 = vpop.permute.xlu0 %1394
        %1398 = vset.pattern.permute.xlu0 0
        %1399 = vperm.xlu0 %1398, %v1373
        %v1400 = vpop.permute.xlu0 %1399
        %1403 = vset.pattern.permute.xlu0 0
        %1404 = vperm.xlu0 %1403, %v1374
        %v1405 = vpop.permute.xlu0 %1404
        %1408 = vset.pattern.permute.xlu0 0
        %1409 = vperm.xlu0 %1408, %v1375
        %v1410 = vpop.permute.xlu0 %1409
        %1413 = vset.pattern.permute.xlu0 0
        %1414 = vperm.xlu0 %1413, %v1376
        %v1415 = vpop.permute.xlu0 %1414
        %v1418 = vsel %vm994, %v1360, 0
        %v1421 = vsel %vm994, %v1361, 0
        %v1424 = vsel %vm994, %v1362, 0
        %v1427 = vsel %vm994, %v1363, 0
        %v1430 = vsel %vm994, %v1364, 0
        %v1433 = vsel %vm994, %v1365, 0
        %v1436 = vsel %vm994, %v1366, 0
        %v1439 = vsel %vm994, %v1367, 0
        %1441 = vmatprep.subr.mxu0 %v1344
        %1442 = vmatpush1.msra.mxu0 %v1343
        %1443 = vmatprep.subr.mxu0 %v1346
        %1444 = vmatpush1.msra.mxu0 %v1345
        %1445 = vmatprep.subr.mxu0 %v1348
        %1446 = vmatpush1.msra.mxu0 %v1347
        %1447 = vmatprep.subr.mxu0 %v1350
        %1448 = vmatpush1.msra.mxu0 %v1349
        %1449 = vmatprep.subr.mxu0 %v1352
        %1450 = vmatpush1.msra.mxu0 %v1351
        %1451 = vmatprep.subr.mxu0 %v1354
        %1452 = vmatpush1.msra.mxu0 %v1353
        %1453 = vmatprep.subr.mxu0 %v1356
        %1454 = vmatpush1.msra.mxu0 %v1355
        %1455 = vmatprep.subr.mxu0 %v1358
        %1456 = vmatpush1.msra.mxu0 %v1357
        %1457 = vmatprep.subr.mxu0 0.0
        %1458 = vmatpush1.msra.mxu0 0.0
        %1459 = vmatprep.subr.mxu0 0.0
        %1460 = vmatpush1.msra.mxu0 0.0
        %1461 = vmatprep.subr.mxu0 0.0
        %1462 = vmatpush1.msra.mxu0 0.0
        %1463 = vmatprep.subr.mxu0 0.0
        %1464 = vmatpush1.msra.mxu0 0.0
        %1465 = vmatprep.subr.mxu0 0.0
        %1466 = vmatpush1.msra.mxu0 0.0
        %1467 = vmatprep.subr.mxu0 0.0
        %1468 = vmatpush1.msra.mxu0 0.0
        %1469 = vmatprep.subr.mxu0 0.0
        %1470 = vmatpush1.msra.mxu0 0.0
        %1471 = vmatprep.subr.mxu0 0.0
        %1472 = vmatpush1.msra.mxu0 0.0
        %1473 = vmatprep.subr.mxu0 0.0
        %1474 = vmatpush1.msra.mxu0 0.0
        %1475 = vmatprep.subr.mxu0 0.0
        %1476 = vmatpush1.msra.mxu0 0.0
        %1477 = vmatprep.subr.mxu0 0.0
        %1478 = vmatpush1.msra.mxu0 0.0
        %1479 = vmatprep.subr.mxu0 0.0
        %1480 = vmatpush1.msra.mxu0 0.0
        %1481 = vmatprep.subr.mxu0 0.0
        %1482 = vmatpush1.msra.mxu0 0.0
        %1483 = vmatprep.subr.mxu0 0.0
        %1484 = vmatpush1.msra.mxu0 0.0
        %1485 = vmatprep.subr.mxu0 0.0
        %1486 = vmatpush1.msra.mxu0 0.0
        %1487 = vmatprep.subr.mxu0 0.0
        %1488 = vmatpush1.msra.mxu0 0.0
        %1489 = vmatprep.subr.mxu0 0.0
        %1490 = vmatpush1.msra.mxu0 0.0
        %1491 = vmatprep.subr.mxu0 0.0
        %1492 = vmatpush1.msra.mxu0 0.0
        %1493 = vmatprep.subr.mxu0 0.0
        %1494 = vmatpush1.msra.mxu0 0.0
        %1495 = vmatprep.subr.mxu0 0.0
        %1496 = vmatpush1.msra.mxu0 0.0
        %1497 = vmatprep.subr.mxu0 0.0
        %1498 = vmatpush1.msra.mxu0 0.0
        %1499 = vmatprep.subr.mxu0 0.0
        %1500 = vmatpush1.msra.mxu0 0.0
        %1501 = vmatprep.subr.mxu0 0.0
        %1502 = vmatpush1.msra.mxu0 0.0
        %1503 = vmatprep.subr.mxu0 0.0
        %1504 = vmatpush1.msra.mxu0 0.0
        %1505 = vmatprep.mubr.f32.mxu0 0.0
        %1506 = vmatmul.mubr.f32.gmra.mrb[0].mxu0 %v1418
        %v1507 = vpop.f32.mrb[0].mxu0
        %v1508 = vadd.f32 %v1380, %v1507
        %v1509 = vpop.f32.mrb[0].mxu0
        %v1510 = vadd.f32 %v1380, %v1509
        %1511 = vmatprep.mubr.f32.mxu0 0.0
        %1512 = vmatmul.mubr.f32.gmra.mrb[0].mxu0 %v1421
        %v1513 = vpop.f32.mrb[0].mxu0
        %v1514 = vadd.f32 %v1385, %v1513
        %v1515 = vpop.f32.mrb[0].mxu0
        %v1516 = vadd.f32 %v1385, %v1515
        %1517 = vmatprep.mubr.f32.mxu0 0.0
        %1518 = vmatmul.mubr.f32.gmra.mrb[0].mxu0 %v1424
        %v1519 = vpop.f32.mrb[0].mxu0
        %v1520 = vadd.f32 %v1390, %v1519
        %v1521 = vpop.f32.mrb[0].mxu0
        %v1522 = vadd.f32 %v1390, %v1521
        %1523 = vmatprep.mubr.f32.mxu0 0.0
        %1524 = vmatmul.mubr.f32.gmra.mrb[0].mxu0 %v1427
        %v1525 = vpop.f32.mrb[0].mxu0
        %v1526 = vadd.f32 %v1395, %v1525
        %v1527 = vpop.f32.mrb[0].mxu0
        %v1528 = vadd.f32 %v1395, %v1527
        %1529 = vmatprep.mubr.f32.mxu0 0.0
        %1530 = vmatmul.mubr.f32.gmra.mrb[0].mxu0 %v1430
        %v1531 = vpop.f32.mrb[0].mxu0
        %v1532 = vadd.f32 %v1400, %v1531
        %v1533 = vpop.f32.mrb[0].mxu0
        %v1534 = vadd.f32 %v1400, %v1533
        %1535 = vmatprep.mubr.f32.mxu0 0.0
        %1536 = vmatmul.mubr.f32.gmra.mrb[0].mxu0 %v1433
        %v1537 = vpop.f32.mrb[0].mxu0
        %v1538 = vadd.f32 %v1405, %v1537
        %v1539 = vpop.f32.mrb[0].mxu0
        %v1540 = vadd.f32 %v1405, %v1539
        %1541 = vmatprep.mubr.f32.mxu0 0.0
        %1542 = vmatmul.mubr.f32.gmra.mrb[0].mxu0 %v1436
        %v1543 = vpop.f32.mrb[0].mxu0
        %v1544 = vadd.f32 %v1410, %v1543
        %v1545 = vpop.f32.mrb[0].mxu0
        %v1546 = vadd.f32 %v1410, %v1545
        %1547 = vmatprep.mubr.f32.mxu0 0.0
        %1548 = vmatmul.mubr.f32.gmra.mrb[0].mxu0 %v1439
        %v1549 = vpop.f32.mrb[0].mxu0
        %v1550 = vadd.f32 %v1415, %v1549
        %v1551 = vpop.f32.mrb[0].mxu0
        %v1552 = vadd.f32 %v1415, %v1551
        %1553 = vdwg.mxu0
        %v1554 = vmax.f32 %v1508, 0.0
        %v1555 = vmax.f32 %v1510, 0.0
        %v1556 = vmax.f32 %v1514, 0.0
        %v1557 = vmax.f32 %v1516, 0.0
        %v1558 = vmax.f32 %v1520, 0.0
        %v1559 = vmax.f32 %v1522, 0.0
        %v1560 = vmax.f32 %v1526, 0.0
        %v1561 = vmax.f32 %v1528, 0.0
        %v1562 = vmax.f32 %v1532, 0.0
        %v1563 = vmax.f32 %v1534, 0.0
        %v1564 = vmax.f32 %v1538, 0.0
        %v1565 = vmax.f32 %v1540, 0.0
        %v1566 = vmax.f32 %v1544, 0.0
        %v1567 = vmax.f32 %v1546, 0.0
        %v1568 = vmax.f32 %v1550, 0.0
        %v1569 = vmax.f32 %v1552, 0.0
        %s1570 = scalar_lea.vmem %s3, 192
        %v1571 = vld [vmem:[%s1570] sm:$0xff]
        %v1572 = vld [vmem:[%s1570 + $0x8] sm:$0xff]
        %v1573 = vld [vmem:[%s1570 + $0x10] sm:$0xff]
        %v1574 = vld [vmem:[%s1570 + $0x18] sm:$0xff]
        %v1575 = vld [vmem:[%s1570 + $0x20] sm:$0xff]
        %v1576 = vld [vmem:[%s1570 + $0x28] sm:$0xff]
        %v1577 = vld [vmem:[%s1570 + $0x30] sm:$0xff]
        %v1578 = vld [vmem:[%s1570 + $0x38] sm:$0xff]
        %s1579 = scalar_lea.vmem %s4, 192
        %v1580 = vld [vmem:[%s1579] sm:$0xff]
        %v1581 = vld [vmem:[%s1579 + $0x8] sm:$0xff]
        %v1582 = vld [vmem:[%s1579 + $0x10] sm:$0xff]
        %v1583 = vld [vmem:[%s1579 + $0x18] sm:$0xff]
        %v1584 = vld [vmem:[%s1579 + $0x20] sm:$0xff]
        %v1585 = vld [vmem:[%s1579 + $0x28] sm:$0xff]
        %v1586 = vld [vmem:[%s1579 + $0x30] sm:$0xff]
        %v1587 = vld [vmem:[%s1579 + $0x38] sm:$0xff]
        %1589 = vset.pattern.permute.xlu0 0
        %1590 = vperm.xlu0 %1589, %v1580
        %v1591 = vpop.permute.xlu0 %1590
        %1594 = vset.pattern.permute.xlu0 0
        %1595 = vperm.xlu0 %1594, %v1581
        %v1596 = vpop.permute.xlu0 %1595
        %1599 = vset.pattern.permute.xlu0 0
        %1600 = vperm.xlu0 %1599, %v1582
        %v1601 = vpop.permute.xlu0 %1600
        %1604 = vset.pattern.permute.xlu0 0
        %1605 = vperm.xlu0 %1604, %v1583
        %v1606 = vpop.permute.xlu0 %1605
        %1609 = vset.pattern.permute.xlu0 0
        %1610 = vperm.xlu0 %1609, %v1584
        %v1611 = vpop.permute.xlu0 %1610
        %1614 = vset.pattern.permute.xlu0 0
        %1615 = vperm.xlu0 %1614, %v1585
        %v1616 = vpop.permute.xlu0 %1615
        %1619 = vset.pattern.permute.xlu0 0
        %1620 = vperm.xlu0 %1619, %v1586
        %v1621 = vpop.permute.xlu0 %1620
        %1624 = vset.pattern.permute.xlu0 0
        %1625 = vperm.xlu0 %1624, %v1587
        %v1626 = vpop.permute.xlu0 %1625
        %v1629 = vsel %vm994, %v1571, 0
        %v1632 = vsel %vm994, %v1572, 0
        %v1635 = vsel %vm994, %v1573, 0
        %v1638 = vsel %vm994, %v1574, 0
        %v1641 = vsel %vm994, %v1575, 0
        %v1644 = vsel %vm994, %v1576, 0
        %v1647 = vsel %vm994, %v1577, 0
        %v1650 = vsel %vm994, %v1578, 0
        %1652 = vmatprep.subr.mxu0 %v1555
        %1653 = vmatpush1.msra.mxu0 %v1554
        %1654 = vmatprep.subr.mxu0 %v1557
        %1655 = vmatpush1.msra.mxu0 %v1556
        %1656 = vmatprep.subr.mxu0 %v1559
        %1657 = vmatpush1.msra.mxu0 %v1558
        %1658 = vmatprep.subr.mxu0 %v1561
        %1659 = vmatpush1.msra.mxu0 %v1560
        %1660 = vmatprep.subr.mxu0 %v1563
        %1661 = vmatpush1.msra.mxu0 %v1562
        %1662 = vmatprep.subr.mxu0 %v1565
        %1663 = vmatpush1.msra.mxu0 %v1564
        %1664 = vmatprep.subr.mxu0 %v1567
        %1665 = vmatpush1.msra.mxu0 %v1566
        %1666 = vmatprep.subr.mxu0 %v1569
        %1667 = vmatpush1.msra.mxu0 %v1568
        %1668 = vmatprep.subr.mxu0 0.0
        %1669 = vmatpush1.msra.mxu0 0.0
        %1670 = vmatprep.subr.mxu0 0.0
        %1671 = vmatpush1.msra.mxu0 0.0
        %1672 = vmatprep.subr.mxu0 0.0
        %1673 = vmatpush1.msra.mxu0 0.0
        %1674 = vmatprep.subr.mxu0 0.0
        %1675 = vmatpush1.msra.mxu0 0.0
        %1676 = vmatprep.subr.mxu0 0.0
        %1677 = vmatpush1.msra.mxu0 0.0
        %1678 = vmatprep.subr.mxu0 0.0
        %1679 = vmatpush1.msra.mxu0 0.0
        %1680 = vmatprep.subr.mxu0 0.0
        %1681 = vmatpush1.msra.mxu0 0.0
        %1682 = vmatprep.subr.mxu0 0.0
        %1683 = vmatpush1.msra.mxu0 0.0
        %1684 = vmatprep.subr.mxu0 0.0
        %1685 = vmatpush1.msra.mxu0 0.0
        %1686 = vmatprep.subr.mxu0 0.0
        %1687 = vmatpush1.msra.mxu0 0.0
        %1688 = vmatprep.subr.mxu0 0.0
        %1689 = vmatpush1.msra.mxu0 0.0
        %1690 = vmatprep.subr.mxu0 0.0
        %1691 = vmatpush1.msra.mxu0 0.0
        %1692 = vmatprep.subr.mxu0 0.0
        %1693 = vmatpush1.msra.mxu0 0.0
        %1694 = vmatprep.subr.mxu0 0.0
        %1695 = vmatpush1.msra.mxu0 0.0
        %1696 = vmatprep.subr.mxu0 0.0
        %1697 = vmatpush1.msra.mxu0 0.0
        %1698 = vmatprep.subr.mxu0 0.0
        %1699 = vmatpush1.msra.mxu0 0.0
        %1700 = vmatprep.subr.mxu0 0.0
        %1701 = vmatpush1.msra.mxu0 0.0
        %1702 = vmatprep.subr.mxu0 0.0
        %1703 = vmatpush1.msra.mxu0 0.0
        %1704 = vmatprep.subr.mxu0 0.0
        %1705 = vmatpush1.msra.mxu0 0.0
        %1706 = vmatprep.subr.mxu0 0.0
        %1707 = vmatpush1.msra.mxu0 0.0
        %1708 = vmatprep.subr.mxu0 0.0
        %1709 = vmatpush1.msra.mxu0 0.0
        %1710 = vmatprep.subr.mxu0 0.0
        %1711 = vmatpush1.msra.mxu0 0.0
        %1712 = vmatprep.subr.mxu0 0.0
        %1713 = vmatpush1.msra.mxu0 0.0
        %1714 = vmatprep.subr.mxu0 0.0
        %1715 = vmatpush1.msra.mxu0 0.0
        %1716 = vmatprep.mubr.f32.mxu0 0.0
        %1717 = vmatmul.mubr.f32.gmra.mrb[0].mxu0 %v1629
        %v1718 = vpop.f32.mrb[0].mxu0
        %v1719 = vadd.f32 %v1591, %v1718
        %v1720 = vpop.f32.mrb[0].mxu0
        %v1721 = vadd.f32 %v1591, %v1720
        %1722 = vmatprep.mubr.f32.mxu0 0.0
        %1723 = vmatmul.mubr.f32.gmra.mrb[0].mxu0 %v1632
        %v1724 = vpop.f32.mrb[0].mxu0
        %v1725 = vadd.f32 %v1596, %v1724
        %v1726 = vpop.f32.mrb[0].mxu0
        %v1727 = vadd.f32 %v1596, %v1726
        %1728 = vmatprep.mubr.f32.mxu0 0.0
        %1729 = vmatmul.mubr.f32.gmra.mrb[0].mxu0 %v1635
        %v1730 = vpop.f32.mrb[0].mxu0
        %v1731 = vadd.f32 %v1601, %v1730
        %v1732 = vpop.f32.mrb[0].mxu0
        %v1733 = vadd.f32 %v1601, %v1732
        %1734 = vmatprep.mubr.f32.mxu0 0.0
        %1735 = vmatmul.mubr.f32.gmra.mrb[0].mxu0 %v1638
        %v1736 = vpop.f32.mrb[0].mxu0
        %v1737 = vadd.f32 %v1606, %v1736
        %v1738 = vpop.f32.mrb[0].mxu0
        %v1739 = vadd.f32 %v1606, %v1738
        %1740 = vmatprep.mubr.f32.mxu0 0.0
        %1741 = vmatmul.mubr.f32.gmra.mrb[0].mxu0 %v1641
        %v1742 = vpop.f32.mrb[0].mxu0
        %v1743 = vadd.f32 %v1611, %v1742
        %v1744 = vpop.f32.mrb[0].mxu0
        %v1745 = vadd.f32 %v1611, %v1744
        %1746 = vmatprep.mubr.f32.mxu0 0.0
        %1747 = vmatmul.mubr.f32.gmra.mrb[0].mxu0 %v1644
        %v1748 = vpop.f32.mrb[0].mxu0
        %v1749 = vadd.f32 %v1616, %v1748
        %v1750 = vpop.f32.mrb[0].mxu0
        %v1751 = vadd.f32 %v1616, %v1750
        %1752 = vmatprep.mubr.f32.mxu0 0.0
        %1753 = vmatmul.mubr.f32.gmra.mrb[0].mxu0 %v1647
        %v1754 = vpop.f32.mrb[0].mxu0
        %v1755 = vadd.f32 %v1621, %v1754
        %v1756 = vpop.f32.mrb[0].mxu0
        %v1757 = vadd.f32 %v1621, %v1756
        %1758 = vmatprep.mubr.f32.mxu0 0.0
        %1759 = vmatmul.mubr.f32.gmra.mrb[0].mxu0 %v1650
        %v1760 = vpop.f32.mrb[0].mxu0
        %v1761 = vadd.f32 %v1626, %v1760
        %v1762 = vpop.f32.mrb[0].mxu0
        %v1763 = vadd.f32 %v1626, %v1762
        %1764 = vdwg.mxu0
        %v1765 = vmax.f32 %v1719, 0.0
        %v1766 = vmax.f32 %v1721, 0.0
        %v1767 = vmax.f32 %v1725, 0.0
        %v1768 = vmax.f32 %v1727, 0.0
        %v1769 = vmax.f32 %v1731, 0.0
        %v1770 = vmax.f32 %v1733, 0.0
        %v1771 = vmax.f32 %v1737, 0.0
        %v1772 = vmax.f32 %v1739, 0.0
        %v1773 = vmax.f32 %v1743, 0.0
        %v1774 = vmax.f32 %v1745, 0.0
        %v1775 = vmax.f32 %v1749, 0.0
        %v1776 = vmax.f32 %v1751, 0.0
        %v1777 = vmax.f32 %v1755, 0.0
        %v1778 = vmax.f32 %v1757, 0.0
        %v1779 = vmax.f32 %v1761, 0.0
        %v1780 = vmax.f32 %v1763, 0.0
        %s1781 = scalar_lea.vmem %s3, 256
        %v1782 = vld [vmem:[%s1781] sm:$0xff]
        %v1783 = vld [vmem:[%s1781 + $0x8] sm:$0xff]
        %v1784 = vld [vmem:[%s1781 + $0x10] sm:$0xff]
        %v1785 = vld [vmem:[%s1781 + $0x18] sm:$0xff]
        %v1786 = vld [vmem:[%s1781 + $0x20] sm:$0xff]
        %v1787 = vld [vmem:[%s1781 + $0x28] sm:$0xff]
        %v1788 = vld [vmem:[%s1781 + $0x30] sm:$0xff]
        %v1789 = vld [vmem:[%s1781 + $0x38] sm:$0xff]
        %s1790 = scalar_lea.vmem %s4, 256
        %v1791 = vld [vmem:[%s1790] sm:$0xff]
        %v1792 = vld [vmem:[%s1790 + $0x8] sm:$0xff]
        %v1793 = vld [vmem:[%s1790 + $0x10] sm:$0xff]
        %v1794 = vld [vmem:[%s1790 + $0x18] sm:$0xff]
        %v1795 = vld [vmem:[%s1790 + $0x20] sm:$0xff]
        %v1796 = vld [vmem:[%s1790 + $0x28] sm:$0xff]
        %v1797 = vld [vmem:[%s1790 + $0x30] sm:$0xff]
        %v1798 = vld [vmem:[%s1790 + $0x38] sm:$0xff]
        %1800 = vset.pattern.permute.xlu0 0
        %1801 = vperm.xlu0 %1800, %v1791
        %v1802 = vpop.permute.xlu0 %1801
        %1805 = vset.pattern.permute.xlu0 0
        %1806 = vperm.xlu0 %1805, %v1792
        %v1807 = vpop.permute.xlu0 %1806
        %1810 = vset.pattern.permute.xlu0 0
        %1811 = vperm.xlu0 %1810, %v1793
        %v1812 = vpop.permute.xlu0 %1811
        %1815 = vset.pattern.permute.xlu0 0
        %1816 = vperm.xlu0 %1815, %v1794
        %v1817 = vpop.permute.xlu0 %1816
        %1820 = vset.pattern.permute.xlu0 0
        %1821 = vperm.xlu0 %1820, %v1795
        %v1822 = vpop.permute.xlu0 %1821
        %1825 = vset.pattern.permute.xlu0 0
        %1826 = vperm.xlu0 %1825, %v1796
        %v1827 = vpop.permute.xlu0 %1826
        %1830 = vset.pattern.permute.xlu0 0
        %1831 = vperm.xlu0 %1830, %v1797
        %v1832 = vpop.permute.xlu0 %1831
        %1835 = vset.pattern.permute.xlu0 0
        %1836 = vperm.xlu0 %1835, %v1798
        %v1837 = vpop.permute.xlu0 %1836
        %v1840 = vsel %vm994, %v1782, 0
        %v1843 = vsel %vm994, %v1783, 0
        %v1846 = vsel %vm994, %v1784, 0
        %v1849 = vsel %vm994, %v1785, 0
        %v1852 = vsel %vm994, %v1786, 0
        %v1855 = vsel %vm994, %v1787, 0
        %v1858 = vsel %vm994, %v1788, 0
        %v1861 = vsel %vm994, %v1789, 0
        %1863 = vmatprep.subr.mxu0 %v1766
        %1864 = vmatpush1.msra.mxu0 %v1765
        %1865 = vmatprep.subr.mxu0 %v1768
        %1866 = vmatpush1.msra.mxu0 %v1767
        %1867 = vmatprep.subr.mxu0 %v1770
        %1868 = vmatpush1.msra.mxu0 %v1769
        %1869 = vmatprep.subr.mxu0 %v1772
        %1870 = vmatpush1.msra.mxu0 %v1771
        %1871 = vmatprep.subr.mxu0 %v1774
        %1872 = vmatpush1.msra.mxu0 %v1773
        %1873 = vmatprep.subr.mxu0 %v1776
        %1874 = vmatpush1.msra.mxu0 %v1775
        %1875 = vmatprep.subr.mxu0 %v1778
        %1876 = vmatpush1.msra.mxu0 %v1777
        %1877 = vmatprep.subr.mxu0 %v1780
        %1878 = vmatpush1.msra.mxu0 %v1779
        %1879 = vmatprep.subr.mxu0 0.0
        %1880 = vmatpush1.msra.mxu0 0.0
        %1881 = vmatprep.subr.mxu0 0.0
        %1882 = vmatpush1.msra.mxu0 0.0
        %1883 = vmatprep.subr.mxu0 0.0
        %1884 = vmatpush1.msra.mxu0 0.0
        %1885 = vmatprep.subr.mxu0 0.0
        %1886 = vmatpush1.msra.mxu0 0.0
        %1887 = vmatprep.subr.mxu0 0.0
        %1888 = vmatpush1.msra.mxu0 0.0
        %1889 = vmatprep.subr.mxu0 0.0
        %1890 = vmatpush1.msra.mxu0 0.0
        %1891 = vmatprep.subr.mxu0 0.0
        %1892 = vmatpush1.msra.mxu0 0.0
        %1893 = vmatprep.subr.mxu0 0.0
        %1894 = vmatpush1.msra.mxu0 0.0
        %1895 = vmatprep.subr.mxu0 0.0
        %1896 = vmatpush1.msra.mxu0 0.0
        %1897 = vmatprep.subr.mxu0 0.0
        %1898 = vmatpush1.msra.mxu0 0.0
        %1899 = vmatprep.subr.mxu0 0.0
        %1900 = vmatpush1.msra.mxu0 0.0
        %1901 = vmatprep.subr.mxu0 0.0
        %1902 = vmatpush1.msra.mxu0 0.0
        %1903 = vmatprep.subr.mxu0 0.0
        %1904 = vmatpush1.msra.mxu0 0.0
        %1905 = vmatprep.subr.mxu0 0.0
        %1906 = vmatpush1.msra.mxu0 0.0
        %1907 = vmatprep.subr.mxu0 0.0
        %1908 = vmatpush1.msra.mxu0 0.0
        %1909 = vmatprep.subr.mxu0 0.0
        %1910 = vmatpush1.msra.mxu0 0.0
        %1911 = vmatprep.subr.mxu0 0.0
        %1912 = vmatpush1.msra.mxu0 0.0
        %1913 = vmatprep.subr.mxu0 0.0
        %1914 = vmatpush1.msra.mxu0 0.0
        %1915 = vmatprep.subr.mxu0 0.0
        %1916 = vmatpush1.msra.mxu0 0.0
        %1917 = vmatprep.subr.mxu0 0.0
        %1918 = vmatpush1.msra.mxu0 0.0
        %1919 = vmatprep.subr.mxu0 0.0
        %1920 = vmatpush1.msra.mxu0 0.0
        %1921 = vmatprep.subr.mxu0 0.0
        %1922 = vmatpush1.msra.mxu0 0.0
        %1923 = vmatprep.subr.mxu0 0.0
        %1924 = vmatpush1.msra.mxu0 0.0
        %1925 = vmatprep.subr.mxu0 0.0
        %1926 = vmatpush1.msra.mxu0 0.0
        %1927 = vmatprep.mubr.f32.mxu0 0.0
        %1928 = vmatmul.mubr.f32.gmra.mrb[0].mxu0 %v1840
        %v1929 = vpop.f32.mrb[0].mxu0
        %v1930 = vadd.f32 %v1802, %v1929
        %v1931 = vpop.f32.mrb[0].mxu0
        %v1932 = vadd.f32 %v1802, %v1931
        %1933 = vmatprep.mubr.f32.mxu0 0.0
        %1934 = vmatmul.mubr.f32.gmra.mrb[0].mxu0 %v1843
        %v1935 = vpop.f32.mrb[0].mxu0
        %v1936 = vadd.f32 %v1807, %v1935
        %v1937 = vpop.f32.mrb[0].mxu0
        %v1938 = vadd.f32 %v1807, %v1937
        %1939 = vmatprep.mubr.f32.mxu0 0.0
        %1940 = vmatmul.mubr.f32.gmra.mrb[0].mxu0 %v1846
        %v1941 = vpop.f32.mrb[0].mxu0
        %v1942 = vadd.f32 %v1812, %v1941
        %v1943 = vpop.f32.mrb[0].mxu0
        %v1944 = vadd.f32 %v1812, %v1943
        %1945 = vmatprep.mubr.f32.mxu0 0.0
        %1946 = vmatmul.mubr.f32.gmra.mrb[0].mxu0 %v1849
        %v1947 = vpop.f32.mrb[0].mxu0
        %v1948 = vadd.f32 %v1817, %v1947
        %v1949 = vpop.f32.mrb[0].mxu0
        %v1950 = vadd.f32 %v1817, %v1949
        %1951 = vmatprep.mubr.f32.mxu0 0.0
        %1952 = vmatmul.mubr.f32.gmra.mrb[0].mxu0 %v1852
        %v1953 = vpop.f32.mrb[0].mxu0
        %v1954 = vadd.f32 %v1822, %v1953
        %v1955 = vpop.f32.mrb[0].mxu0
        %v1956 = vadd.f32 %v1822, %v1955
        %1957 = vmatprep.mubr.f32.mxu0 0.0
        %1958 = vmatmul.mubr.f32.gmra.mrb[0].mxu0 %v1855
        %v1959 = vpop.f32.mrb[0].mxu0
        %v1960 = vadd.f32 %v1827, %v1959
        %v1961 = vpop.f32.mrb[0].mxu0
        %v1962 = vadd.f32 %v1827, %v1961
        %1963 = vmatprep.mubr.f32.mxu0 0.0
        %1964 = vmatmul.mubr.f32.gmra.mrb[0].mxu0 %v1858
        %v1965 = vpop.f32.mrb[0].mxu0
        %v1966 = vadd.f32 %v1832, %v1965
        %v1967 = vpop.f32.mrb[0].mxu0
        %v1968 = vadd.f32 %v1832, %v1967
        %1969 = vmatprep.mubr.f32.mxu0 0.0
        %1970 = vmatmul.mubr.f32.gmra.mrb[0].mxu0 %v1861
        %v1971 = vpop.f32.mrb[0].mxu0
        %v1972 = vadd.f32 %v1837, %v1971
        %v1973 = vpop.f32.mrb[0].mxu0
        %v1974 = vadd.f32 %v1837, %v1973
        %1975 = vdwg.mxu0
        %v1976 = vmax.f32 %v1930, 0.0
        %v1977 = vmax.f32 %v1932, 0.0
        %v1978 = vmax.f32 %v1936, 0.0
        %v1979 = vmax.f32 %v1938, 0.0
        %v1980 = vmax.f32 %v1942, 0.0
        %v1981 = vmax.f32 %v1944, 0.0
        %v1982 = vmax.f32 %v1948, 0.0
        %v1983 = vmax.f32 %v1950, 0.0
        %v1984 = vmax.f32 %v1954, 0.0
        %v1985 = vmax.f32 %v1956, 0.0
        %v1986 = vmax.f32 %v1960, 0.0
        %v1987 = vmax.f32 %v1962, 0.0
        %v1988 = vmax.f32 %v1966, 0.0
        %v1989 = vmax.f32 %v1968, 0.0
        %v1990 = vmax.f32 %v1972, 0.0
        %v1991 = vmax.f32 %v1974, 0.0
        %s1992 = scalar_lea.vmem %s3, 320
        %v1993 = vld [vmem:[%s1992] sm:$0xff]
        %v1994 = vld [vmem:[%s1992 + $0x8] sm:$0xff]
        %v1995 = vld [vmem:[%s1992 + $0x10] sm:$0xff]
        %v1996 = vld [vmem:[%s1992 + $0x18] sm:$0xff]
        %v1997 = vld [vmem:[%s1992 + $0x20] sm:$0xff]
        %v1998 = vld [vmem:[%s1992 + $0x28] sm:$0xff]
        %v1999 = vld [vmem:[%s1992 + $0x30] sm:$0xff]
        %v2000 = vld [vmem:[%s1992 + $0x38] sm:$0xff]
        %s2001 = scalar_lea.vmem %s4, 320
        %v2002 = vld [vmem:[%s2001] sm:$0xff]
        %v2003 = vld [vmem:[%s2001 + $0x8] sm:$0xff]
        %v2004 = vld [vmem:[%s2001 + $0x10] sm:$0xff]
        %v2005 = vld [vmem:[%s2001 + $0x18] sm:$0xff]
        %v2006 = vld [vmem:[%s2001 + $0x20] sm:$0xff]
        %v2007 = vld [vmem:[%s2001 + $0x28] sm:$0xff]
        %v2008 = vld [vmem:[%s2001 + $0x30] sm:$0xff]
        %v2009 = vld [vmem:[%s2001 + $0x38] sm:$0xff]
        %2011 = vset.pattern.permute.xlu0 0
        %2012 = vperm.xlu0 %2011, %v2002
        %v2013 = vpop.permute.xlu0 %2012
        %2016 = vset.pattern.permute.xlu0 0
        %2017 = vperm.xlu0 %2016, %v2003
        %v2018 = vpop.permute.xlu0 %2017
        %2021 = vset.pattern.permute.xlu0 0
        %2022 = vperm.xlu0 %2021, %v2004
        %v2023 = vpop.permute.xlu0 %2022
        %2026 = vset.pattern.permute.xlu0 0
        %2027 = vperm.xlu0 %2026, %v2005
        %v2028 = vpop.permute.xlu0 %2027
        %2031 = vset.pattern.permute.xlu0 0
        %2032 = vperm.xlu0 %2031, %v2006
        %v2033 = vpop.permute.xlu0 %2032
        %2036 = vset.pattern.permute.xlu0 0
        %2037 = vperm.xlu0 %2036, %v2007
        %v2038 = vpop.permute.xlu0 %2037
        %2041 = vset.pattern.permute.xlu0 0
        %2042 = vperm.xlu0 %2041, %v2008
        %v2043 = vpop.permute.xlu0 %2042
        %2046 = vset.pattern.permute.xlu0 0
        %2047 = vperm.xlu0 %2046, %v2009
        %v2048 = vpop.permute.xlu0 %2047
        %v2051 = vsel %vm994, %v1993, 0
        %v2054 = vsel %vm994, %v1994, 0
        %v2057 = vsel %vm994, %v1995, 0
        %v2060 = vsel %vm994, %v1996, 0
        %v2063 = vsel %vm994, %v1997, 0
        %v2066 = vsel %vm994, %v1998, 0
        %v2069 = vsel %vm994, %v1999, 0
        %v2072 = vsel %vm994, %v2000, 0
        %2074 = vmatprep.subr.mxu0 %v1977
        %2075 = vmatpush1.msra.mxu0 %v1976
        %2076 = vmatprep.subr.mxu0 %v1979
        %2077 = vmatpush1.msra.mxu0 %v1978
        %2078 = vmatprep.subr.mxu0 %v1981
        %2079 = vmatpush1.msra.mxu0 %v1980
        %2080 = vmatprep.subr.mxu0 %v1983
        %2081 = vmatpush1.msra.mxu0 %v1982
        %2082 = vmatprep.subr.mxu0 %v1985
        %2083 = vmatpush1.msra.mxu0 %v1984
        %2084 = vmatprep.subr.mxu0 %v1987
        %2085 = vmatpush1.msra.mxu0 %v1986
        %2086 = vmatprep.subr.mxu0 %v1989
        %2087 = vmatpush1.msra.mxu0 %v1988
        %2088 = vmatprep.subr.mxu0 %v1991
        %2089 = vmatpush1.msra.mxu0 %v1990
        %2090 = vmatprep.subr.mxu0 0.0
        %2091 = vmatpush1.msra.mxu0 0.0
        %2092 = vmatprep.subr.mxu0 0.0
        %2093 = vmatpush1.msra.mxu0 0.0
        %2094 = vmatprep.subr.mxu0 0.0
        %2095 = vmatpush1.msra.mxu0 0.0
        %2096 = vmatprep.subr.mxu0 0.0
        %2097 = vmatpush1.msra.mxu0 0.0
        %2098 = vmatprep.subr.mxu0 0.0
        %2099 = vmatpush1.msra.mxu0 0.0
        %2100 = vmatprep.subr.mxu0 0.0
        %2101 = vmatpush1.msra.mxu0 0.0
        %2102 = vmatprep.subr.mxu0 0.0
        %2103 = vmatpush1.msra.mxu0 0.0
        %2104 = vmatprep.subr.mxu0 0.0
        %2105 = vmatpush1.msra.mxu0 0.0
        %2106 = vmatprep.subr.mxu0 0.0
        %2107 = vmatpush1.msra.mxu0 0.0
        %2108 = vmatprep.subr.mxu0 0.0
        %2109 = vmatpush1.msra.mxu0 0.0
        %2110 = vmatprep.subr.mxu0 0.0
        %2111 = vmatpush1.msra.mxu0 0.0
        %2112 = vmatprep.subr.mxu0 0.0
        %2113 = vmatpush1.msra.mxu0 0.0
        %2114 = vmatprep.subr.mxu0 0.0
        %2115 = vmatpush1.msra.mxu0 0.0
        %2116 = vmatprep.subr.mxu0 0.0
        %2117 = vmatpush1.msra.mxu0 0.0
        %2118 = vmatprep.subr.mxu0 0.0
        %2119 = vmatpush1.msra.mxu0 0.0
        %2120 = vmatprep.subr.mxu0 0.0
        %2121 = vmatpush1.msra.mxu0 0.0
        %2122 = vmatprep.subr.mxu0 0.0
        %2123 = vmatpush1.msra.mxu0 0.0
        %2124 = vmatprep.subr.mxu0 0.0
        %2125 = vmatpush1.msra.mxu0 0.0
        %2126 = vmatprep.subr.mxu0 0.0
        %2127 = vmatpush1.msra.mxu0 0.0
        %2128 = vmatprep.subr.mxu0 0.0
        %2129 = vmatpush1.msra.mxu0 0.0
        %2130 = vmatprep.subr.mxu0 0.0
        %2131 = vmatpush1.msra.mxu0 0.0
        %2132 = vmatprep.subr.mxu0 0.0
        %2133 = vmatpush1.msra.mxu0 0.0
        %2134 = vmatprep.subr.mxu0 0.0
        %2135 = vmatpush1.msra.mxu0 0.0
        %2136 = vmatprep.subr.mxu0 0.0
        %2137 = vmatpush1.msra.mxu0 0.0
        %2138 = vmatprep.mubr.f32.mxu0 0.0
        %2139 = vmatmul.mubr.f32.gmra.mrb[0].mxu0 %v2051
        %v2140 = vpop.f32.mrb[0].mxu0
        %v2141 = vadd.f32 %v2013, %v2140
        %v2142 = vpop.f32.mrb[0].mxu0
        %v2143 = vadd.f32 %v2013, %v2142
        %2144 = vmatprep.mubr.f32.mxu0 0.0
        %2145 = vmatmul.mubr.f32.gmra.mrb[0].mxu0 %v2054
        %v2146 = vpop.f32.mrb[0].mxu0
        %v2147 = vadd.f32 %v2018, %v2146
        %v2148 = vpop.f32.mrb[0].mxu0
        %v2149 = vadd.f32 %v2018, %v2148
        %2150 = vmatprep.mubr.f32.mxu0 0.0
        %2151 = vmatmul.mubr.f32.gmra.mrb[0].mxu0 %v2057
        %v2152 = vpop.f32.mrb[0].mxu0
        %v2153 = vadd.f32 %v2023, %v2152
        %v2154 = vpop.f32.mrb[0].mxu0
        %v2155 = vadd.f32 %v2023, %v2154
        %2156 = vmatprep.mubr.f32.mxu0 0.0
        %2157 = vmatmul.mubr.f32.gmra.mrb[0].mxu0 %v2060
        %v2158 = vpop.f32.mrb[0].mxu0
        %v2159 = vadd.f32 %v2028, %v2158
        %v2160 = vpop.f32.mrb[0].mxu0
        %v2161 = vadd.f32 %v2028, %v2160
        %2162 = vmatprep.mubr.f32.mxu0 0.0
        %2163 = vmatmul.mubr.f32.gmra.mrb[0].mxu0 %v2063
        %v2164 = vpop.f32.mrb[0].mxu0
        %v2165 = vadd.f32 %v2033, %v2164
        %v2166 = vpop.f32.mrb[0].mxu0
        %v2167 = vadd.f32 %v2033, %v2166
        %2168 = vmatprep.mubr.f32.mxu0 0.0
        %2169 = vmatmul.mubr.f32.gmra.mrb[0].mxu0 %v2066
        %v2170 = vpop.f32.mrb[0].mxu0
        %v2171 = vadd.f32 %v2038, %v2170
        %v2172 = vpop.f32.mrb[0].mxu0
        %v2173 = vadd.f32 %v2038, %v2172
        %2174 = vmatprep.mubr.f32.mxu0 0.0
        %2175 = vmatmul.mubr.f32.gmra.mrb[0].mxu0 %v2069
        %v2176 = vpop.f32.mrb[0].mxu0
        %v2177 = vadd.f32 %v2043, %v2176
        %v2178 = vpop.f32.mrb[0].mxu0
        %v2179 = vadd.f32 %v2043, %v2178
        %2180 = vmatprep.mubr.f32.mxu0 0.0
        %2181 = vmatmul.mubr.f32.gmra.mrb[0].mxu0 %v2072
        %v2182 = vpop.f32.mrb[0].mxu0
        %v2183 = vadd.f32 %v2048, %v2182
        %v2184 = vpop.f32.mrb[0].mxu0
        %v2185 = vadd.f32 %v2048, %v2184
        %2186 = vdwg.mxu0
        %v2187 = vmax.f32 %v2141, 0.0
        %v2188 = vmax.f32 %v2143, 0.0
        %v2189 = vmax.f32 %v2147, 0.0
        %v2190 = vmax.f32 %v2149, 0.0
        %v2191 = vmax.f32 %v2153, 0.0
        %v2192 = vmax.f32 %v2155, 0.0
        %v2193 = vmax.f32 %v2159, 0.0
        %v2194 = vmax.f32 %v2161, 0.0
        %v2195 = vmax.f32 %v2165, 0.0
        %v2196 = vmax.f32 %v2167, 0.0
        %v2197 = vmax.f32 %v2171, 0.0
        %v2198 = vmax.f32 %v2173, 0.0
        %v2199 = vmax.f32 %v2177, 0.0
        %v2200 = vmax.f32 %v2179, 0.0
        %v2201 = vmax.f32 %v2183, 0.0
        %v2202 = vmax.f32 %v2185, 0.0
        %s2203 = scalar_lea.vmem %s3, 384
        %v2204 = vld [vmem:[%s2203] sm:$0xff]
        %v2205 = vld [vmem:[%s2203 + $0x8] sm:$0xff]
        %v2206 = vld [vmem:[%s2203 + $0x10] sm:$0xff]
        %v2207 = vld [vmem:[%s2203 + $0x18] sm:$0xff]
        %v2208 = vld [vmem:[%s2203 + $0x20] sm:$0xff]
        %v2209 = vld [vmem:[%s2203 + $0x28] sm:$0xff]
        %v2210 = vld [vmem:[%s2203 + $0x30] sm:$0xff]
        %v2211 = vld [vmem:[%s2203 + $0x38] sm:$0xff]
        %s2212 = scalar_lea.vmem %s4, 384
        %v2213 = vld [vmem:[%s2212] sm:$0xff]
        %v2214 = vld [vmem:[%s2212 + $0x8] sm:$0xff]
        %v2215 = vld [vmem:[%s2212 + $0x10] sm:$0xff]
        %v2216 = vld [vmem:[%s2212 + $0x18] sm:$0xff]
        %v2217 = vld [vmem:[%s2212 + $0x20] sm:$0xff]
        %v2218 = vld [vmem:[%s2212 + $0x28] sm:$0xff]
        %v2219 = vld [vmem:[%s2212 + $0x30] sm:$0xff]
        %v2220 = vld [vmem:[%s2212 + $0x38] sm:$0xff]
        %2222 = vset.pattern.permute.xlu0 0
        %2223 = vperm.xlu0 %2222, %v2213
        %v2224 = vpop.permute.xlu0 %2223
        %2227 = vset.pattern.permute.xlu0 0
        %2228 = vperm.xlu0 %2227, %v2214
        %v2229 = vpop.permute.xlu0 %2228
        %2232 = vset.pattern.permute.xlu0 0
        %2233 = vperm.xlu0 %2232, %v2215
        %v2234 = vpop.permute.xlu0 %2233
        %2237 = vset.pattern.permute.xlu0 0
        %2238 = vperm.xlu0 %2237, %v2216
        %v2239 = vpop.permute.xlu0 %2238
        %2242 = vset.pattern.permute.xlu0 0
        %2243 = vperm.xlu0 %2242, %v2217
        %v2244 = vpop.permute.xlu0 %2243
        %2247 = vset.pattern.permute.xlu0 0
        %2248 = vperm.xlu0 %2247, %v2218
        %v2249 = vpop.permute.xlu0 %2248
        %2252 = vset.pattern.permute.xlu0 0
        %2253 = vperm.xlu0 %2252, %v2219
        %v2254 = vpop.permute.xlu0 %2253
        %2257 = vset.pattern.permute.xlu0 0
        %2258 = vperm.xlu0 %2257, %v2220
        %v2259 = vpop.permute.xlu0 %2258
        %v2262 = vsel %vm994, %v2204, 0
        %v2265 = vsel %vm994, %v2205, 0
        %v2268 = vsel %vm994, %v2206, 0
        %v2271 = vsel %vm994, %v2207, 0
        %v2274 = vsel %vm994, %v2208, 0
        %v2277 = vsel %vm994, %v2209, 0
        %v2280 = vsel %vm994, %v2210, 0
        %v2283 = vsel %vm994, %v2211, 0
        %2285 = vmatprep.subr.mxu0 %v2188
        %2286 = vmatpush1.msra.mxu0 %v2187
        %2287 = vmatprep.subr.mxu0 %v2190
        %2288 = vmatpush1.msra.mxu0 %v2189
        %2289 = vmatprep.subr.mxu0 %v2192
        %2290 = vmatpush1.msra.mxu0 %v2191
        %2291 = vmatprep.subr.mxu0 %v2194
        %2292 = vmatpush1.msra.mxu0 %v2193
        %2293 = vmatprep.subr.mxu0 %v2196
        %2294 = vmatpush1.msra.mxu0 %v2195
        %2295 = vmatprep.subr.mxu0 %v2198
        %2296 = vmatpush1.msra.mxu0 %v2197
        %2297 = vmatprep.subr.mxu0 %v2200
        %2298 = vmatpush1.msra.mxu0 %v2199
        %2299 = vmatprep.subr.mxu0 %v2202
        %2300 = vmatpush1.msra.mxu0 %v2201
        %2301 = vmatprep.subr.mxu0 0.0
        %2302 = vmatpush1.msra.mxu0 0.0
        %2303 = vmatprep.subr.mxu0 0.0
        %2304 = vmatpush1.msra.mxu0 0.0
        %2305 = vmatprep.subr.mxu0 0.0
        %2306 = vmatpush1.msra.mxu0 0.0
        %2307 = vmatprep.subr.mxu0 0.0
        %2308 = vmatpush1.msra.mxu0 0.0
        %2309 = vmatprep.subr.mxu0 0.0
        %2310 = vmatpush1.msra.mxu0 0.0
        %2311 = vmatprep.subr.mxu0 0.0
        %2312 = vmatpush1.msra.mxu0 0.0
        %2313 = vmatprep.subr.mxu0 0.0
        %2314 = vmatpush1.msra.mxu0 0.0
        %2315 = vmatprep.subr.mxu0 0.0
        %2316 = vmatpush1.msra.mxu0 0.0
        %2317 = vmatprep.subr.mxu0 0.0
        %2318 = vmatpush1.msra.mxu0 0.0
        %2319 = vmatprep.subr.mxu0 0.0
        %2320 = vmatpush1.msra.mxu0 0.0
        %2321 = vmatprep.subr.mxu0 0.0
        %2322 = vmatpush1.msra.mxu0 0.0
        %2323 = vmatprep.subr.mxu0 0.0
        %2324 = vmatpush1.msra.mxu0 0.0
        %2325 = vmatprep.subr.mxu0 0.0
        %2326 = vmatpush1.msra.mxu0 0.0
        %2327 = vmatprep.subr.mxu0 0.0
        %2328 = vmatpush1.msra.mxu0 0.0
        %2329 = vmatprep.subr.mxu0 0.0
        %2330 = vmatpush1.msra.mxu0 0.0
        %2331 = vmatprep.subr.mxu0 0.0
        %2332 = vmatpush1.msra.mxu0 0.0
        %2333 = vmatprep.subr.mxu0 0.0
        %2334 = vmatpush1.msra.mxu0 0.0
        %2335 = vmatprep.subr.mxu0 0.0
        %2336 = vmatpush1.msra.mxu0 0.0
        %2337 = vmatprep.subr.mxu0 0.0
        %2338 = vmatpush1.msra.mxu0 0.0
        %2339 = vmatprep.subr.mxu0 0.0
        %2340 = vmatpush1.msra.mxu0 0.0
        %2341 = vmatprep.subr.mxu0 0.0
        %2342 = vmatpush1.msra.mxu0 0.0
        %2343 = vmatprep.subr.mxu0 0.0
        %2344 = vmatpush1.msra.mxu0 0.0
        %2345 = vmatprep.subr.mxu0 0.0
        %2346 = vmatpush1.msra.mxu0 0.0
        %2347 = vmatprep.subr.mxu0 0.0
        %2348 = vmatpush1.msra.mxu0 0.0
        %2349 = vmatprep.mubr.f32.mxu0 0.0
        %2350 = vmatmul.mubr.f32.gmra.mrb[0].mxu0 %v2262
        %v2351 = vpop.f32.mrb[0].mxu0
        %v2352 = vadd.f32 %v2224, %v2351
        %v2353 = vpop.f32.mrb[0].mxu0
        %v2354 = vadd.f32 %v2224, %v2353
        %2355 = vmatprep.mubr.f32.mxu0 0.0
        %2356 = vmatmul.mubr.f32.gmra.mrb[0].mxu0 %v2265
        %v2357 = vpop.f32.mrb[0].mxu0
        %v2358 = vadd.f32 %v2229, %v2357
        %v2359 = vpop.f32.mrb[0].mxu0
        %v2360 = vadd.f32 %v2229, %v2359
        %2361 = vmatprep.mubr.f32.mxu0 0.0
        %2362 = vmatmul.mubr.f32.gmra.mrb[0].mxu0 %v2268
        %v2363 = vpop.f32.mrb[0].mxu0
        %v2364 = vadd.f32 %v2234, %v2363
        %v2365 = vpop.f32.mrb[0].mxu0
        %v2366 = vadd.f32 %v2234, %v2365
        %2367 = vmatprep.mubr.f32.mxu0 0.0
        %2368 = vmatmul.mubr.f32.gmra.mrb[0].mxu0 %v2271
        %v2369 = vpop.f32.mrb[0].mxu0
        %v2370 = vadd.f32 %v2239, %v2369
        %v2371 = vpop.f32.mrb[0].mxu0
        %v2372 = vadd.f32 %v2239, %v2371
        %2373 = vmatprep.mubr.f32.mxu0 0.0
        %2374 = vmatmul.mubr.f32.gmra.mrb[0].mxu0 %v2274
        %v2375 = vpop.f32.mrb[0].mxu0
        %v2376 = vadd.f32 %v2244, %v2375
        %v2377 = vpop.f32.mrb[0].mxu0
        %v2378 = vadd.f32 %v2244, %v2377
        %2379 = vmatprep.mubr.f32.mxu0 0.0
        %2380 = vmatmul.mubr.f32.gmra.mrb[0].mxu0 %v2277
        %v2381 = vpop.f32.mrb[0].mxu0
        %v2382 = vadd.f32 %v2249, %v2381
        %v2383 = vpop.f32.mrb[0].mxu0
        %v2384 = vadd.f32 %v2249, %v2383
        %2385 = vmatprep.mubr.f32.mxu0 0.0
        %2386 = vmatmul.mubr.f32.gmra.mrb[0].mxu0 %v2280
        %v2387 = vpop.f32.mrb[0].mxu0
        %v2388 = vadd.f32 %v2254, %v2387
        %v2389 = vpop.f32.mrb[0].mxu0
        %v2390 = vadd.f32 %v2254, %v2389
        %2391 = vmatprep.mubr.f32.mxu0 0.0
        %2392 = vmatmul.mubr.f32.gmra.mrb[0].mxu0 %v2283
        %v2393 = vpop.f32.mrb[0].mxu0
        %v2394 = vadd.f32 %v2259, %v2393
        %v2395 = vpop.f32.mrb[0].mxu0
        %v2396 = vadd.f32 %v2259, %v2395
        %2397 = vdwg.mxu0
        %v2398 = vmax.f32 %v2352, 0.0
        %v2399 = vmax.f32 %v2354, 0.0
        %v2400 = vmax.f32 %v2358, 0.0
        %v2401 = vmax.f32 %v2360, 0.0
        %v2402 = vmax.f32 %v2364, 0.0
        %v2403 = vmax.f32 %v2366, 0.0
        %v2404 = vmax.f32 %v2370, 0.0
        %v2405 = vmax.f32 %v2372, 0.0
        %v2406 = vmax.f32 %v2376, 0.0
        %v2407 = vmax.f32 %v2378, 0.0
        %v2408 = vmax.f32 %v2382, 0.0
        %v2409 = vmax.f32 %v2384, 0.0
        %v2410 = vmax.f32 %v2388, 0.0
        %v2411 = vmax.f32 %v2390, 0.0
        %v2412 = vmax.f32 %v2394, 0.0
        %v2413 = vmax.f32 %v2396, 0.0
        %s2414 = scalar_lea.vmem %s3, 448
        %v2415 = vld [vmem:[%s2414] sm:$0xff]
        %v2416 = vld [vmem:[%s2414 + $0x8] sm:$0xff]
        %v2417 = vld [vmem:[%s2414 + $0x10] sm:$0xff]
        %v2418 = vld [vmem:[%s2414 + $0x18] sm:$0xff]
        %v2419 = vld [vmem:[%s2414 + $0x20] sm:$0xff]
        %v2420 = vld [vmem:[%s2414 + $0x28] sm:$0xff]
        %v2421 = vld [vmem:[%s2414 + $0x30] sm:$0xff]
        %v2422 = vld [vmem:[%s2414 + $0x38] sm:$0xff]
        %s2423 = scalar_lea.vmem %s4, 448
        %v2424 = vld [vmem:[%s2423] sm:$0xff]
        %v2425 = vld [vmem:[%s2423 + $0x8] sm:$0xff]
        %v2426 = vld [vmem:[%s2423 + $0x10] sm:$0xff]
        %v2427 = vld [vmem:[%s2423 + $0x18] sm:$0xff]
        %v2428 = vld [vmem:[%s2423 + $0x20] sm:$0xff]
        %v2429 = vld [vmem:[%s2423 + $0x28] sm:$0xff]
        %v2430 = vld [vmem:[%s2423 + $0x30] sm:$0xff]
        %v2431 = vld [vmem:[%s2423 + $0x38] sm:$0xff]
        %2433 = vset.pattern.permute.xlu0 0
        %2434 = vperm.xlu0 %2433, %v2424
        %v2435 = vpop.permute.xlu0 %2434
        %2438 = vset.pattern.permute.xlu0 0
        %2439 = vperm.xlu0 %2438, %v2425
        %v2440 = vpop.permute.xlu0 %2439
        %2443 = vset.pattern.permute.xlu0 0
        %2444 = vperm.xlu0 %2443, %v2426
        %v2445 = vpop.permute.xlu0 %2444
        %2448 = vset.pattern.permute.xlu0 0
        %2449 = vperm.xlu0 %2448, %v2427
        %v2450 = vpop.permute.xlu0 %2449
        %2453 = vset.pattern.permute.xlu0 0
        %2454 = vperm.xlu0 %2453, %v2428
        %v2455 = vpop.permute.xlu0 %2454
        %2458 = vset.pattern.permute.xlu0 0
        %2459 = vperm.xlu0 %2458, %v2429
        %v2460 = vpop.permute.xlu0 %2459
        %2463 = vset.pattern.permute.xlu0 0
        %2464 = vperm.xlu0 %2463, %v2430
        %v2465 = vpop.permute.xlu0 %2464
        %2468 = vset.pattern.permute.xlu0 0
        %2469 = vperm.xlu0 %2468, %v2431
        %v2470 = vpop.permute.xlu0 %2469
        %v2473 = vsel %vm994, %v2415, 0
        %v2476 = vsel %vm994, %v2416, 0
        %v2479 = vsel %vm994, %v2417, 0
        %v2482 = vsel %vm994, %v2418, 0
        %v2485 = vsel %vm994, %v2419, 0
        %v2488 = vsel %vm994, %v2420, 0
        %v2491 = vsel %vm994, %v2421, 0
        %v2494 = vsel %vm994, %v2422, 0
        %2496 = vmatprep.subr.mxu0 %v2399
        %2497 = vmatpush1.msra.mxu0 %v2398
        %2498 = vmatprep.subr.mxu0 %v2401
        %2499 = vmatpush1.msra.mxu0 %v2400
        %2500 = vmatprep.subr.mxu0 %v2403
        %2501 = vmatpush1.msra.mxu0 %v2402
        %2502 = vmatprep.subr.mxu0 %v2405
        %2503 = vmatpush1.msra.mxu0 %v2404
        %2504 = vmatprep.subr.mxu0 %v2407
        %2505 = vmatpush1.msra.mxu0 %v2406
        %2506 = vmatprep.subr.mxu0 %v2409
        %2507 = vmatpush1.msra.mxu0 %v2408
        %2508 = vmatprep.subr.mxu0 %v2411
        %2509 = vmatpush1.msra.mxu0 %v2410
        %2510 = vmatprep.subr.mxu0 %v2413
        %2511 = vmatpush1.msra.mxu0 %v2412
        %2512 = vmatprep.subr.mxu0 0.0
        %2513 = vmatpush1.msra.mxu0 0.0
        %2514 = vmatprep.subr.mxu0 0.0
        %2515 = vmatpush1.msra.mxu0 0.0
        %2516 = vmatprep.subr.mxu0 0.0
        %2517 = vmatpush1.msra.mxu0 0.0
        %2518 = vmatprep.subr.mxu0 0.0
        %2519 = vmatpush1.msra.mxu0 0.0
        %2520 = vmatprep.subr.mxu0 0.0
        %2521 = vmatpush1.msra.mxu0 0.0
        %2522 = vmatprep.subr.mxu0 0.0
        %2523 = vmatpush1.msra.mxu0 0.0
        %2524 = vmatprep.subr.mxu0 0.0
        %2525 = vmatpush1.msra.mxu0 0.0
        %2526 = vmatprep.subr.mxu0 0.0
        %2527 = vmatpush1.msra.mxu0 0.0
        %2528 = vmatprep.subr.mxu0 0.0
        %2529 = vmatpush1.msra.mxu0 0.0
        %2530 = vmatprep.subr.mxu0 0.0
        %2531 = vmatpush1.msra.mxu0 0.0
        %2532 = vmatprep.subr.mxu0 0.0
        %2533 = vmatpush1.msra.mxu0 0.0
        %2534 = vmatprep.subr.mxu0 0.0
        %2535 = vmatpush1.msra.mxu0 0.0
        %2536 = vmatprep.subr.mxu0 0.0
        %2537 = vmatpush1.msra.mxu0 0.0
        %2538 = vmatprep.subr.mxu0 0.0
        %2539 = vmatpush1.msra.mxu0 0.0
        %2540 = vmatprep.subr.mxu0 0.0
        %2541 = vmatpush1.msra.mxu0 0.0
        %2542 = vmatprep.subr.mxu0 0.0
        %2543 = vmatpush1.msra.mxu0 0.0
        %2544 = vmatprep.subr.mxu0 0.0
        %2545 = vmatpush1.msra.mxu0 0.0
        %2546 = vmatprep.subr.mxu0 0.0
        %2547 = vmatpush1.msra.mxu0 0.0
        %2548 = vmatprep.subr.mxu0 0.0
        %2549 = vmatpush1.msra.mxu0 0.0
        %2550 = vmatprep.subr.mxu0 0.0
        %2551 = vmatpush1.msra.mxu0 0.0
        %2552 = vmatprep.subr.mxu0 0.0
        %2553 = vmatpush1.msra.mxu0 0.0
        %2554 = vmatprep.subr.mxu0 0.0
        %2555 = vmatpush1.msra.mxu0 0.0
        %2556 = vmatprep.subr.mxu0 0.0
        %2557 = vmatpush1.msra.mxu0 0.0
        %2558 = vmatprep.subr.mxu0 0.0
        %2559 = vmatpush1.msra.mxu0 0.0
        %2560 = vmatprep.mubr.f32.mxu0 0.0
        %2561 = vmatmul.mubr.f32.gmra.mrb[0].mxu0 %v2473
        %v2562 = vpop.f32.mrb[0].mxu0
        %v2563 = vadd.f32 %v2435, %v2562
        %v2564 = vpop.f32.mrb[0].mxu0
        %v2565 = vadd.f32 %v2435, %v2564
        %2566 = vmatprep.mubr.f32.mxu0 0.0
        %2567 = vmatmul.mubr.f32.gmra.mrb[0].mxu0 %v2476
        %v2568 = vpop.f32.mrb[0].mxu0
        %v2569 = vadd.f32 %v2440, %v2568
        %v2570 = vpop.f32.mrb[0].mxu0
        %v2571 = vadd.f32 %v2440, %v2570
        %2572 = vmatprep.mubr.f32.mxu0 0.0
        %2573 = vmatmul.mubr.f32.gmra.mrb[0].mxu0 %v2479
        %v2574 = vpop.f32.mrb[0].mxu0
        %v2575 = vadd.f32 %v2445, %v2574
        %v2576 = vpop.f32.mrb[0].mxu0
        %v2577 = vadd.f32 %v2445, %v2576
        %2578 = vmatprep.mubr.f32.mxu0 0.0
        %2579 = vmatmul.mubr.f32.gmra.mrb[0].mxu0 %v2482
        %v2580 = vpop.f32.mrb[0].mxu0
        %v2581 = vadd.f32 %v2450, %v2580
        %v2582 = vpop.f32.mrb[0].mxu0
        %v2583 = vadd.f32 %v2450, %v2582
        %2584 = vmatprep.mubr.f32.mxu0 0.0
        %2585 = vmatmul.mubr.f32.gmra.mrb[0].mxu0 %v2485
        %v2586 = vpop.f32.mrb[0].mxu0
        %v2587 = vadd.f32 %v2455, %v2586
        %v2588 = vpop.f32.mrb[0].mxu0
        %v2589 = vadd.f32 %v2455, %v2588
        %2590 = vmatprep.mubr.f32.mxu0 0.0
        %2591 = vmatmul.mubr.f32.gmra.mrb[0].mxu0 %v2488
        %v2592 = vpop.f32.mrb[0].mxu0
        %v2593 = vadd.f32 %v2460, %v2592
        %v2594 = vpop.f32.mrb[0].mxu0
        %v2595 = vadd.f32 %v2460, %v2594
        %2596 = vmatprep.mubr.f32.mxu0 0.0
        %2597 = vmatmul.mubr.f32.gmra.mrb[0].mxu0 %v2491
        %v2598 = vpop.f32.mrb[0].mxu0
        %v2599 = vadd.f32 %v2465, %v2598
        %v2600 = vpop.f32.mrb[0].mxu0
        %v2601 = vadd.f32 %v2465, %v2600
        %2602 = vmatprep.mubr.f32.mxu0 0.0
        %2603 = vmatmul.mubr.f32.gmra.mrb[0].mxu0 %v2494
        %v2604 = vpop.f32.mrb[0].mxu0
        %v2605 = vadd.f32 %v2470, %v2604
        %v2606 = vpop.f32.mrb[0].mxu0
        %v2607 = vadd.f32 %v2470, %v2606
        %2608 = vdwg.mxu0
        %v2609 = vmax.f32 %v2563, 0.0
        %v2610 = vmax.f32 %v2565, 0.0
        %v2611 = vmax.f32 %v2569, 0.0
        %v2612 = vmax.f32 %v2571, 0.0
        %v2613 = vmax.f32 %v2575, 0.0
        %v2614 = vmax.f32 %v2577, 0.0
        %v2615 = vmax.f32 %v2581, 0.0
        %v2616 = vmax.f32 %v2583, 0.0
        %v2617 = vmax.f32 %v2587, 0.0
        %v2618 = vmax.f32 %v2589, 0.0
        %v2619 = vmax.f32 %v2593, 0.0
        %v2620 = vmax.f32 %v2595, 0.0
        %v2621 = vmax.f32 %v2599, 0.0
        %v2622 = vmax.f32 %v2601, 0.0
        %v2623 = vmax.f32 %v2605, 0.0
        %v2624 = vmax.f32 %v2607, 0.0
        %v2625 = vld [vmem:[%s5] sm:$0x7]
        %v2626 = vld [vmem:[%s6] sm:$0x7]
        %2628 = vset.pattern.permute.xlu0 0
        %2629 = vperm.xlu0 %2628, %v2626
        %v2630 = vpop.permute.xlu0 %2629
        %v2633 = vsel %vm994, %v2625, 0
        %2635 = vmatprep.subr.mxu0 %v2610
        %2636 = vmatpush1.msra.mxu0 %v2609
        %2637 = vmatprep.subr.mxu0 %v2612
        %2638 = vmatpush1.msra.mxu0 %v2611
        %2639 = vmatprep.subr.mxu0 %v2614
        %2640 = vmatpush1.msra.mxu0 %v2613
        %2641 = vmatprep.subr.mxu0 %v2616
        %2642 = vmatpush1.msra.mxu0 %v2615
        %2643 = vmatprep.subr.mxu0 %v2618
        %2644 = vmatpush1.msra.mxu0 %v2617
        %2645 = vmatprep.subr.mxu0 %v2620
        %2646 = vmatpush1.msra.mxu0 %v2619
        %2647 = vmatprep.subr.mxu0 %v2622
        %2648 = vmatpush1.msra.mxu0 %v2621
        %2649 = vmatprep.subr.mxu0 %v2624
        %2650 = vmatpush1.msra.mxu0 %v2623
        %2651 = vmatprep.subr.mxu0 0.0
        %2652 = vmatpush1.msra.mxu0 0.0
        %2653 = vmatprep.subr.mxu0 0.0
        %2654 = vmatpush1.msra.mxu0 0.0
        %2655 = vmatprep.subr.mxu0 0.0
        %2656 = vmatpush1.msra.mxu0 0.0
        %2657 = vmatprep.subr.mxu0 0.0
        %2658 = vmatpush1.msra.mxu0 0.0
        %2659 = vmatprep.subr.mxu0 0.0
        %2660 = vmatpush1.msra.mxu0 0.0
        %2661 = vmatprep.subr.mxu0 0.0
        %2662 = vmatpush1.msra.mxu0 0.0
        %2663 = vmatprep.subr.mxu0 0.0
        %2664 = vmatpush1.msra.mxu0 0.0
        %2665 = vmatprep.subr.mxu0 0.0
        %2666 = vmatpush1.msra.mxu0 0.0
        %2667 = vmatprep.subr.mxu0 0.0
        %2668 = vmatpush1.msra.mxu0 0.0
        %2669 = vmatprep.subr.mxu0 0.0
        %2670 = vmatpush1.msra.mxu0 0.0
        %2671 = vmatprep.subr.mxu0 0.0
        %2672 = vmatpush1.msra.mxu0 0.0
        %2673 = vmatprep.subr.mxu0 0.0
        %2674 = vmatpush1.msra.mxu0 0.0
        %2675 = vmatprep.subr.mxu0 0.0
        %2676 = vmatpush1.msra.mxu0 0.0
        %2677 = vmatprep.subr.mxu0 0.0
        %2678 = vmatpush1.msra.mxu0 0.0
        %2679 = vmatprep.subr.mxu0 0.0
        %2680 = vmatpush1.msra.mxu0 0.0
        %2681 = vmatprep.subr.mxu0 0.0
        %2682 = vmatpush1.msra.mxu0 0.0
        %2683 = vmatprep.subr.mxu0 0.0
        %2684 = vmatpush1.msra.mxu0 0.0
        %2685 = vmatprep.subr.mxu0 0.0
        %2686 = vmatpush1.msra.mxu0 0.0
        %2687 = vmatprep.subr.mxu0 0.0
        %2688 = vmatpush1.msra.mxu0 0.0
        %2689 = vmatprep.subr.mxu0 0.0
        %2690 = vmatpush1.msra.mxu0 0.0
        %2691 = vmatprep.subr.mxu0 0.0
        %2692 = vmatpush1.msra.mxu0 0.0
        %2693 = vmatprep.subr.mxu0 0.0
        %2694 = vmatpush1.msra.mxu0 0.0
        %2695 = vmatprep.subr.mxu0 0.0
        %2696 = vmatpush1.msra.mxu0 0.0
        %2697 = vmatprep.subr.mxu0 0.0
        %2698 = vmatpush1.msra.mxu0 0.0
        %2699 = vmatprep.mubr.f32.mxu0 0.0
        %2700 = vmatmul.mubr.f32.gmra.mrb[0].mxu0 %v2633
        %v2701 = vpop.f32.mrb[0].mxu0
        %v2702 = vadd.f32 %v2630, %v2701
        %v2703 = vpop.f32.mrb[0].mxu0
        %v2704 = vadd.f32 %v2630, %v2703
        %2705 = vdwg.mxu0
        %v2706 = vmul.f32 %v2702, 1.442695
        %v2707 = vpow.pop %v2706
        %v2708 = vmul.f32 %v2704, 1.442695
        %v2709 = vpow.pop %v2708
        %v2712 = vcombine.low %v2707, %v2709
        %2714 = vst [vmem:[%s302] sm:$0x77] %v2712
        %s2715 = sand.u32 %s181, 1
        %s2716 = scalar_lea.sflag [#allocation4], %s2715
        %s2717 = sand.u32 %s181, 1
        %s2718 = smul.addr %s2717, 8
        %s2719 = scalar_lea.vmem [#allocation3], %s2718
        // Predicated region
        $region72: #{tpu_custom_call.1} parent=66 // pred_check
          %p2720 = pneg %p191
        $region73: #{tpu_custom_call.1} parent=66 // pred_check_branch
          %2722 = sbr.rel (%p2720) target = $region75
        $region74: #{tpu_custom_call.1} parent=66 // pred_region
          %s2723 = smul.u32 2, %s21
          %s2725 = ssub.s32 128, 128
          %2726 = vsyncadd %s2716, %s2725
          %s2727 = smul.addr %s2723, 64
          %s2728 = scalar_lea.hbm %s7, %s2727
          %s2730 = sshll.u32 %s2719, 4
          %s2731 = int_to_ptr.vmem [resolvable:$true] %s2730
          %2733 = dma.vmem_to_hbm [thread:$0]  %s2731, 128, %s2728, %s2716
        $region75: #{tpu_custom_call.1} parent=66 // pred_fallthru
          _
      $region67: #{tpu_custom_call.1} parent=5 // pred_fallthru
        _
      %p2734 = scmp.le.s32.totalorder 2, %s16
      // Predicated region
      $region76: #{tpu_custom_call.1} parent=5 // pred_check
        %p2735 = pneg %p2734
      $region77: #{tpu_custom_call.1} parent=5 // pred_check_branch
        %2737 = sbr.rel (%p2735) target = $region79
      $region78: #{tpu_custom_call.1} parent=5 // pred_region
        %s2738 = ssub.s32 %s16, 2
        // Predicated region
        $region80: #{tpu_custom_call.1} parent=78 // pred_check
          %p2739 = pneg %p197
        $region81: #{tpu_custom_call.1} parent=78 // pred_check_branch
          %2741 = sbr.rel (%p2739) target = $region83
        $region82: #{tpu_custom_call.1} parent=78 // pred_region
          %s2742 = sand.u32 %s182, 1
          %s2743 = scalar_lea.sflag [#allocation4], %s2742
          %s2744 = sand.u32 %s182, 1
          %s2745 = smul.addr %s2744, 8
          %s2746 = scalar_lea.vmem [#allocation3], %s2745
          %2747 = dma.done %s2743, 128
        $region83: #{tpu_custom_call.1} parent=78 // pred_fallthru
          _
      $region79: #{tpu_custom_call.1} parent=5 // pred_fallthru
        _
    $region6: #{tpu_custom_call.1} parent=1 // loop_footer
      %s20 = sadd.s32 1, %s16
    $region7: #{tpu_custom_call.1} parent=1 // loop_footer_branch
      %15 = sbr.rel target = $region3
    $region8: #{tpu_custom_call.1} parent=1 // loop_exit
      _
    %2748 = vsyncpa [#allocation4], 1
    %s2749 = scalar_lea.sflag [#allocation4], 1
    %2750 = vsyncpa %s2749, 1

</llo_original>
